<compile_context>
chip_gen: v5e
topology: v5e:2x2
jax: 0.10.0
libtpu: 0.0.40
codegen_flags: <defaults>
</compile_context>

<pallas_src>
import jax
import jax.numpy as jnp
from jax.experimental import pallas as pl
from jax.experimental.pallas import tpu as pltpu


def _ru(x, m):
    return (x + m - 1) // m * m


def _dsc_kernel(xh_ref, wdw_ref, wcat_ref, bias_ref, o_ref, lhs_ref):
    """Fused depthwise(3x3) -> [pointwise(1x1) + skip(1x1)] for one (batch, Cout-tile).

    xh_ref  : (1, H+2, Wp+2, Cp)  bf16  halo-padded NHWC activations
    wdw_ref : (9, Cp)             f32   depthwise taps, tap-major
    wcat_ref: (2*Cp, tn)          bf16  [Wpw ; Wsk] stacked along the contraction dim
    bias_ref: (1, tn)             f32   fused bias (b_pw + b_sk + b_dw @ Wpw)
    o_ref   : (1, H, Wp, tn)      bf16
    lhs_ref : (H*Wp, 2*Cp)        bf16  scratch: [depthwise | identity] MXU LHS,
                                        persists across the Cout-tile grid axis
    """
    H, Wp = o_ref.shape[1], o_ref.shape[2]
    cp = xh_ref.shape[3]

    # Depthwise MAC + skip-path repack depend only on the batch index: compute
    # once per batch (j == 0), reuse for every Cout tile.
    @pl.when(pl.program_id(1) == 0)
    def _():
        wdw = wdw_ref[...]                                  # (9, Cp) f32
        # 3x3 depthwise: 9-tap VPU MAC, per-channel weights broadcast on lanes.
        # Per-tap cast keeps only the f32 accumulator live (no f32 halo copy).
        acc = xh_ref[0, 0:H, 0:Wp, :].astype(jnp.float32) * wdw[0]
        for t in range(1, 9):
            di, dj = t // 3, t % 3
            acc = acc + (
                xh_ref[0, di:di + H, dj:dj + Wp, :].astype(jnp.float32) * wdw[t])
        lhs_ref[:, :cp] = acc.astype(jnp.bfloat16).reshape(H * Wp, cp)
        lhs_ref[:, cp:] = xh_ref[0, 1:1 + H, 1:1 + Wp, :].reshape(H * Wp, cp)

    # Pointwise + skip as ONE K = 2*Cp MXU matmul, f32 accumulate, fused-bias
    # epilogue, bf16 store.
    y = jnp.dot(lhs_ref[...], wcat_ref[...], preferred_element_type=jnp.float32)
    y = y + bias_ref[...]
    o_ref[...] = y.reshape(1, H, Wp, y.shape[-1]).astype(o_ref.dtype)


def depthwise_separable_conv(x_nchw, params):
    """Forward of the PyTorch DepthwiseSeparableConv module (NCHW in / NCHW f32 out)."""
    w_dw, b_dw = params["dw_w"], params["dw_b"]   # (C,1,3,3), (C,)
    w_pw, b_pw = params["pw_w"], params["pw_b"]   # (Cout,C,1,1), (Cout,)
    w_sk, b_sk = params["sk_w"], params["sk_b"]   # (Cout,C,1,1), (Cout,)

    N, C, H, W = x_nchw.shape
    Cout = w_pw.shape[0]
    Cp = _ru(C, 128)                  # lane-aligned contraction half-width
    tn = min(_ru(Cout, 128), 256)     # lane-dense out-channel tile
    Coutp = _ru(Cout, tn)
    Wp = _ru(W, 8)                    # sublane-aligned -> (H,Wp,Cp)->(H*Wp,Cp) reshape is free

    # Activations: NCHW -> NHWC bf16; halo + W-alignment + channel pad in one jnp.pad.
    x_nhwc = jnp.transpose(x_nchw, (0, 2, 3, 1)).astype(jnp.bfloat16)
    xh = jnp.pad(x_nhwc, ((0, 0), (1, 1), (1, 1 + Wp - W), (0, Cp - C)))

    # Weights (tiny, prepared once per call).
    wdw = jnp.transpose(w_dw[:, 0], (1, 2, 0)).reshape(9, C).astype(jnp.float32)
    wdw = jnp.pad(wdw, ((0, 0), (0, Cp - C)))

    wpw_m = jnp.transpose(w_pw[:, :, 0, 0], (1, 0)).astype(jnp.float32)   # (C, Cout)
    wsk_m = jnp.transpose(w_sk[:, :, 0, 0], (1, 0)).astype(jnp.float32)   # (C, Cout)
    bias = b_pw + b_sk + b_dw @ wpw_m          # fold depthwise bias through pointwise
    wcat = jnp.concatenate(
        [jnp.pad(wpw_m, ((0, Cp - C), (0, Coutp - Cout))),
         jnp.pad(wsk_m, ((0, Cp - C), (0, Coutp - Cout)))],
        axis=0).astype(jnp.bfloat16)                                       # (2*Cp, Coutp)
    bias_p = jnp.pad(bias, (0, Coutp - Cout)).reshape(1, Coutp).astype(jnp.float32)

    # Scoped-VMEM budget: double-buffered halo + output blocks, persistent LHS
    # scratch, weights, plus the transient f32 accumulator / matmul result.
    vmem_budget = (2 * (H + 2) * (Wp + 2) * Cp * 2     # halo tile (bf16, 2 bufs)
                   + 2 * H * Wp * tn * 2               # output tile (bf16, 2 bufs)
                   + H * Wp * 2 * Cp * 2               # lhs scratch (bf16)
                   + 2 * 2 * Cp * tn * 2               # wcat (bf16, 2 bufs)
                   + H * Wp * Cp * 4                   # f32 depthwise accumulator
                   + H * Wp * tn * 4)                  # f32 matmul result
    vmem_limit = int(min(max(vmem_budget * 5 // 4 + (4 << 20), 32 << 20), 56 << 20))

    # TODO(synk): for feature maps too large for one full-spatial block (v7x has
    # only 64 MiB VMEM/TC) add an H row-tiling grid axis OUTSIDE the Cout-tile
    # axis, with a 2-row halo via manual double-buffered DMA.
    out = pl.pallas_call(
        _dsc_kernel,
        out_shape=jax.ShapeDtypeStruct((N, H, Wp, Coutp), jnp.bfloat16),
        grid_spec=pltpu.PrefetchScalarGridSpec(
            num_scalar_prefetch=0,
            # Grid order (N outer, Cout-tile inner) + constant-in-j index_map for
            # xh is load-bearing: the halo block is DMA'd once per batch, not per
            # Cout tile, and the depthwise scratch carry across j stays valid.
            grid=(N, Coutp // tn),
            in_specs=[
                pl.BlockSpec((1, H + 2, Wp + 2, Cp), lambda n, j: (n, 0, 0, 0)),
                pl.BlockSpec((9, Cp), lambda n, j: (0, 0)),
                pl.BlockSpec((2 * Cp, tn), lambda n, j: (0, j)),
                pl.BlockSpec((1, tn), lambda n, j: (0, j)),
            ],
            out_specs=pl.BlockSpec((1, H, Wp, tn), lambda n, j: (n, 0, 0, j)),
            scratch_shapes=[pltpu.VMEM((H * Wp, 2 * Cp), jnp.bfloat16)],
        ),
        compiler_params=pltpu.CompilerParams(
            # j carries the depthwise/skip scratch across Cout tiles -> "arbitrary";
            # n stays "parallel" for megacore sharding.
            dimension_semantics=("parallel", "arbitrary"),
            vmem_limit_bytes=vmem_limit,
        ),
    )(xh, wdw, wcat, bias_p)

    # Drop padding and return NCHW f32 to match the PyTorch module API.
    # Downstream consumers that can take NHWC bf16 should use `out` directly
    # and skip these epilogue passes.
    out = out[:, :, :W, :Cout]
    return jnp.transpose(out, (0, 3, 1, 2)).astype(jnp.float32)


def _reference(x, params):
    """Pure-JAX f32 reference of the PyTorch module."""
    dn = ("NCHW", "OIHW", "NCHW")
    dw = jax.lax.conv_general_dilated(
        x, params["dw_w"], (1, 1), ((1, 1), (1, 1)),
        feature_group_count=x.shape[1], dimension_numbers=dn)
    dw = dw + params["dw_b"][None, :, None, None]
    pw = jax.lax.conv_general_dilated(
        dw, params["pw_w"], (1, 1), ((0, 0), (0, 0)), dimension_numbers=dn)
    pw = pw + params["pw_b"][None, :, None, None]
    sk = jax.lax.conv_general_dilated(
        x, params["sk_w"], (1, 1), ((0, 0), (0, 0)), dimension_numbers=dn)
    sk = sk + params["sk_b"][None, :, None, None]
    return pw + sk


if __name__ == "__main__":
    in_channels, out_channels = 4, 8
    N, H, W = 2, 16, 16

    key = jax.random.PRNGKey(0)
    ks = jax.random.split(key, 7)
    params = {
        "dw_w": 0.33 * jax.random.normal(ks[0], (in_channels, 1, 3, 3), jnp.float32),
        "dw_b": 0.05 * jax.random.normal(ks[1], (in_channels,), jnp.float32),
        "pw_w": 0.50 * jax.random.normal(ks[2], (out_channels, in_channels, 1, 1), jnp.float32),
        "pw_b": 0.05 * jax.random.normal(ks[3], (out_channels,), jnp.float32),
        "sk_w": 0.50 * jax.random.normal(ks[4], (out_channels, in_channels, 1, 1), jnp.float32),
        "sk_b": 0.05 * jax.random.normal(ks[5], (out_channels,), jnp.float32),
    }
    x = jax.random.normal(ks[6], (N, in_channels, H, W), dtype=jnp.float32)

    fwd = jax.jit(depthwise_separable_conv)
    out = fwd(x, params)
    jax.block_until_ready(out)
    assert out.shape == (N, out_channels, H, W)

    ref = _reference(x, params)
    err = float(jnp.max(jnp.abs(out - ref)))
    # bf16 MXU inputs + bf16 output store -> relaxed tolerance vs. the all-f32 reference.
    assert err < 1.5e-1, f"max abs error {err}"
    print("KERNEL_OK")
</pallas_src>

<mosaic_0001>
module attributes {stable_mosaic.version = 11 : i64} {
  func.func @_dsc_kernel(%arg0: i32, %arg1: i32, %arg2: memref<1x18x18x128xbf16, #tpu.memory_space<vmem>>, %arg3: memref<9x128xf32, #tpu.memory_space<vmem>>, %arg4: memref<256x128xbf16, #tpu.memory_space<vmem>>, %arg5: memref<1x128xf32, #tpu.memory_space<vmem>>, %arg6: memref<1x16x16x128xbf16, #tpu.memory_space<vmem>>, %arg7: memref<256x256xbf16, #tpu.memory_space<vmem>>) attributes {dimension_semantics = [#tpu.dimension_semantics<parallel>, #tpu.dimension_semantics<arbitrary>], iteration_bounds = array<i64: 2, 1>, scalar_prefetch = 0 : i64, scratch_operands = 1 : i64, tpu.core_type = #tpu.core_type<tc>, window_params = [{transform_indices = @transform_0, window_bounds = array<i64: 1, 18, 18, 128>}, {pipeline_mode = #tpu.pipeline_mode<synchronous>, transform_indices = @transform_1, window_bounds = array<i64: 9, 128>}, {transform_indices = @transform_2, window_bounds = array<i64: 256, 128>}, {transform_indices = @transform_3, window_bounds = array<i64: 1, 128>}, {transform_indices = @transform_4, window_bounds = array<i64: 1, 16, 16, 128>}]} {
    %c0_i32 = arith.constant 0 : i32
    %0 = arith.cmpi eq, %arg1, %c0_i32 : i32
    %1 = arith.extui %0 : i1 to i32
    %c0_i32_0 = arith.constant 0 : i32
    %2 = arith.cmpi ne, %1, %c0_i32_0 : i32
    scf.if %2 {
      %c0_10 = arith.constant 0 : index
      %c0_11 = arith.constant 0 : index
      %12 = vector.load %arg3[%c0_10, %c0_11] : memref<9x128xf32, #tpu.memory_space<vmem>>, vector<9x128xf32>
      %c0_12 = arith.constant 0 : index
      %c0_13 = arith.constant 0 : index
      %c0_14 = arith.constant 0 : index
      %c0_15 = arith.constant 0 : index
      %13 = vector.load %arg2[%c0_12, %c0_13, %c0_14, %c0_15] : memref<1x18x18x128xbf16, #tpu.memory_space<vmem>>, vector<1x16x16x128xbf16>
      %14 = vector.shape_cast %13 : vector<1x16x16x128xbf16> to vector<16x16x128xbf16>
      %15 = arith.extf %14 : vector<16x16x128xbf16> to vector<16x16x128xf32>
      %16 = vector.extract_strided_slice %12 {offsets = [0, 0], sizes = [1, 128], strides = [1, 1]} : vector<9x128xf32> to vector<1x128xf32>
      %17 = vector.shape_cast %16 : vector<1x128xf32> to vector<128xf32>
      %18 = vector.shape_cast %17 : vector<128xf32> to vector<1x1x128xf32>
      %19 = vector.broadcast %18 : vector<1x1x128xf32> to vector<16x16x128xf32>
      %20 = arith.mulf %15, %19 : vector<16x16x128xf32>
      %c0_16 = arith.constant 0 : index
      %c0_17 = arith.constant 0 : index
      %c1 = arith.constant 1 : index
      %c0_18 = arith.constant 0 : index
      %21 = vector.load %arg2[%c0_16, %c0_17, %c1, %c0_18] : memref<1x18x18x128xbf16, #tpu.memory_space<vmem>>, vector<1x16x16x128xbf16>
      %22 = vector.shape_cast %21 : vector<1x16x16x128xbf16> to vector<16x16x128xbf16>
      %23 = arith.extf %22 : vector<16x16x128xbf16> to vector<16x16x128xf32>
      %24 = vector.extract_strided_slice %12 {offsets = [1, 0], sizes = [1, 128], strides = [1, 1]} : vector<9x128xf32> to vector<1x128xf32>
      %25 = vector.shape_cast %24 : vector<1x128xf32> to vector<128xf32>
      %26 = vector.shape_cast %25 : vector<128xf32> to vector<1x1x128xf32>
      %27 = vector.broadcast %26 : vector<1x1x128xf32> to vector<16x16x128xf32>
      %28 = arith.mulf %23, %27 : vector<16x16x128xf32>
      %29 = arith.addf %20, %28 : vector<16x16x128xf32>
      %c0_19 = arith.constant 0 : index
      %c0_20 = arith.constant 0 : index
      %c2 = arith.constant 2 : index
      %c0_21 = arith.constant 0 : index
      %30 = vector.load %arg2[%c0_19, %c0_20, %c2, %c0_21] : memref<1x18x18x128xbf16, #tpu.memory_space<vmem>>, vector<1x16x16x128xbf16>
      %31 = vector.shape_cast %30 : vector<1x16x16x128xbf16> to vector<16x16x128xbf16>
      %32 = arith.extf %31 : vector<16x16x128xbf16> to vector<16x16x128xf32>
      %33 = vector.extract_strided_slice %12 {offsets = [2, 0], sizes = [1, 128], strides = [1, 1]} : vector<9x128xf32> to vector<1x128xf32>
      %34 = vector.shape_cast %33 : vector<1x128xf32> to vector<128xf32>
      %35 = vector.shape_cast %34 : vector<128xf32> to vector<1x1x128xf32>
      %36 = vector.broadcast %35 : vector<1x1x128xf32> to vector<16x16x128xf32>
      %37 = arith.mulf %32, %36 : vector<16x16x128xf32>
      %38 = arith.addf %29, %37 : vector<16x16x128xf32>
      %c0_22 = arith.constant 0 : index
      %c1_23 = arith.constant 1 : index
      %c0_24 = arith.constant 0 : index
      %c0_25 = arith.constant 0 : index
      %39 = vector.load %arg2[%c0_22, %c1_23, %c0_24, %c0_25] : memref<1x18x18x128xbf16, #tpu.memory_space<vmem>>, vector<1x16x16x128xbf16>
      %40 = vector.shape_cast %39 : vector<1x16x16x128xbf16> to vector<16x16x128xbf16>
      %41 = arith.extf %40 : vector<16x16x128xbf16> to vector<16x16x128xf32>
      %42 = vector.extract_strided_slice %12 {offsets = [3, 0], sizes = [1, 128], strides = [1, 1]} : vector<9x128xf32> to vector<1x128xf32>
      %43 = vector.shape_cast %42 : vector<1x128xf32> to vector<128xf32>
      %44 = vector.shape_cast %43 : vector<128xf32> to vector<1x1x128xf32>
      %45 = vector.broadcast %44 : vector<1x1x128xf32> to vector<16x16x128xf32>
      %46 = arith.mulf %41, %45 : vector<16x16x128xf32>
      %47 = arith.addf %38, %46 : vector<16x16x128xf32>
      %c0_26 = arith.constant 0 : index
      %c1_27 = arith.constant 1 : index
      %c1_28 = arith.constant 1 : index
      %c0_29 = arith.constant 0 : index
      %48 = vector.load %arg2[%c0_26, %c1_27, %c1_28, %c0_29] : memref<1x18x18x128xbf16, #tpu.memory_space<vmem>>, vector<1x16x16x128xbf16>
      %49 = vector.shape_cast %48 : vector<1x16x16x128xbf16> to vector<16x16x128xbf16>
      %50 = arith.extf %49 : vector<16x16x128xbf16> to vector<16x16x128xf32>
      %51 = vector.extract_strided_slice %12 {offsets = [4, 0], sizes = [1, 128], strides = [1, 1]} : vector<9x128xf32> to vector<1x128xf32>
      %52 = vector.shape_cast %51 : vector<1x128xf32> to vector<128xf32>
      %53 = vector.shape_cast %52 : vector<128xf32> to vector<1x1x128xf32>
      %54 = vector.broadcast %53 : vector<1x1x128xf32> to vector<16x16x128xf32>
      %55 = arith.mulf %50, %54 : vector<16x16x128xf32>
      %56 = arith.addf %47, %55 : vector<16x16x128xf32>
      %c0_30 = arith.constant 0 : index
      %c1_31 = arith.constant 1 : index
      %c2_32 = arith.constant 2 : index
      %c0_33 = arith.constant 0 : index
      %57 = vector.load %arg2[%c0_30, %c1_31, %c2_32, %c0_33] : memref<1x18x18x128xbf16, #tpu.memory_space<vmem>>, vector<1x16x16x128xbf16>
      %58 = vector.shape_cast %57 : vector<1x16x16x128xbf16> to vector<16x16x128xbf16>
      %59 = arith.extf %58 : vector<16x16x128xbf16> to vector<16x16x128xf32>
      %60 = vector.extract_strided_slice %12 {offsets = [5, 0], sizes = [1, 128], strides = [1, 1]} : vector<9x128xf32> to vector<1x128xf32>
      %61 = vector.shape_cast %60 : vector<1x128xf32> to vector<128xf32>
      %62 = vector.shape_cast %61 : vector<128xf32> to vector<1x1x128xf32>
      %63 = vector.broadcast %62 : vector<1x1x128xf32> to vector<16x16x128xf32>
      %64 = arith.mulf %59, %63 : vector<16x16x128xf32>
      %65 = arith.addf %56, %64 : vector<16x16x128xf32>
      %c0_34 = arith.constant 0 : index
      %c2_35 = arith.constant 2 : index
      %c0_36 = arith.constant 0 : index
      %c0_37 = arith.constant 0 : index
      %66 = vector.load %arg2[%c0_34, %c2_35, %c0_36, %c0_37] : memref<1x18x18x128xbf16, #tpu.memory_space<vmem>>, vector<1x16x16x128xbf16>
      %67 = vector.shape_cast %66 : vector<1x16x16x128xbf16> to vector<16x16x128xbf16>
      %68 = arith.extf %67 : vector<16x16x128xbf16> to vector<16x16x128xf32>
      %69 = vector.extract_strided_slice %12 {offsets = [6, 0], sizes = [1, 128], strides = [1, 1]} : vector<9x128xf32> to vector<1x128xf32>
      %70 = vector.shape_cast %69 : vector<1x128xf32> to vector<128xf32>
      %71 = vector.shape_cast %70 : vector<128xf32> to vector<1x1x128xf32>
      %72 = vector.broadcast %71 : vector<1x1x128xf32> to vector<16x16x128xf32>
      %73 = arith.mulf %68, %72 : vector<16x16x128xf32>
      %74 = arith.addf %65, %73 : vector<16x16x128xf32>
      %c0_38 = arith.constant 0 : index
      %c2_39 = arith.constant 2 : index
      %c1_40 = arith.constant 1 : index
      %c0_41 = arith.constant 0 : index
      %75 = vector.load %arg2[%c0_38, %c2_39, %c1_40, %c0_41] : memref<1x18x18x128xbf16, #tpu.memory_space<vmem>>, vector<1x16x16x128xbf16>
      %76 = vector.shape_cast %75 : vector<1x16x16x128xbf16> to vector<16x16x128xbf16>
      %77 = arith.extf %76 : vector<16x16x128xbf16> to vector<16x16x128xf32>
      %78 = vector.extract_strided_slice %12 {offsets = [7, 0], sizes = [1, 128], strides = [1, 1]} : vector<9x128xf32> to vector<1x128xf32>
      %79 = vector.shape_cast %78 : vector<1x128xf32> to vector<128xf32>
      %80 = vector.shape_cast %79 : vector<128xf32> to vector<1x1x128xf32>
      %81 = vector.broadcast %80 : vector<1x1x128xf32> to vector<16x16x128xf32>
      %82 = arith.mulf %77, %81 : vector<16x16x128xf32>
      %83 = arith.addf %74, %82 : vector<16x16x128xf32>
      %c0_42 = arith.constant 0 : index
      %c2_43 = arith.constant 2 : index
      %c2_44 = arith.constant 2 : index
      %c0_45 = arith.constant 0 : index
      %84 = vector.load %arg2[%c0_42, %c2_43, %c2_44, %c0_45] : memref<1x18x18x128xbf16, #tpu.memory_space<vmem>>, vector<1x16x16x128xbf16>
      %85 = vector.shape_cast %84 : vector<1x16x16x128xbf16> to vector<16x16x128xbf16>
      %86 = arith.extf %85 : vector<16x16x128xbf16> to vector<16x16x128xf32>
      %87 = vector.extract_strided_slice %12 {offsets = [8, 0], sizes = [1, 128], strides = [1, 1]} : vector<9x128xf32> to vector<1x128xf32>
      %88 = vector.shape_cast %87 : vector<1x128xf32> to vector<128xf32>
      %89 = vector.shape_cast %88 : vector<128xf32> to vector<1x1x128xf32>
      %90 = vector.broadcast %89 : vector<1x1x128xf32> to vector<16x16x128xf32>
      %91 = arith.mulf %86, %90 : vector<16x16x128xf32>
      %92 = arith.addf %83, %91 : vector<16x16x128xf32>
      %93 = arith.truncf %92 : vector<16x16x128xf32> to vector<16x16x128xbf16>
      %94 = vector.shape_cast %93 : vector<16x16x128xbf16> to vector<256x128xbf16>
      %c0_46 = arith.constant 0 : index
      %c0_47 = arith.constant 0 : index
      %95 = vector.load %arg7[%c0_46, %c0_47] : memref<256x256xbf16, #tpu.memory_space<vmem>>, vector<256x128xbf16>
      tpu.vector_store %arg7[%c0_46, %c0_47], %94 {strides = array<i32>} : memref<256x256xbf16, #tpu.memory_space<vmem>>, vector<256x128xbf16>,
      %c0_48 = arith.constant 0 : index
      %c1_49 = arith.constant 1 : index
      %c1_50 = arith.constant 1 : index
      %c0_51 = arith.constant 0 : index
      %96 = vector.load %arg2[%c0_48, %c1_49, %c1_50, %c0_51] : memref<1x18x18x128xbf16, #tpu.memory_space<vmem>>, vector<1x16x16x128xbf16>
      %97 = vector.shape_cast %96 : vector<1x16x16x128xbf16> to vector<16x16x128xbf16>
      %98 = vector.shape_cast %97 : vector<16x16x128xbf16> to vector<256x128xbf16>
      %c0_52 = arith.constant 0 : index
      %c128 = arith.constant 128 : index
      %99 = vector.load %arg7[%c0_52, %c128] : memref<256x256xbf16, #tpu.memory_space<vmem>>, vector<256x128xbf16>
      tpu.vector_store %arg7[%c0_52, %c128], %98 {strides = array<i32>} : memref<256x256xbf16, #tpu.memory_space<vmem>>, vector<256x128xbf16>,
    } else {
    }
    %c0 = arith.constant 0 : index
    %c0_1 = arith.constant 0 : index
    %3 = vector.load %arg7[%c0, %c0_1] : memref<256x256xbf16, #tpu.memory_space<vmem>>, vector<256x256xbf16>
    %c0_2 = arith.constant 0 : index
    %c0_3 = arith.constant 0 : index
    %4 = vector.load %arg4[%c0_2, %c0_3] : memref<256x128xbf16, #tpu.memory_space<vmem>>, vector<256x128xbf16>
    %cst = arith.constant dense<0.000000e+00> : vector<256x128xf32>
    %5 = tpu.matmul %3, %4, %cst {dimension_numbers = #tpu.dot_dimension_numbers<[1], [0], [0], [1], [0, 0, 1, 1], [], []>} : vector<256x256xbf16>, vector<256x128xbf16>, vector<256x128xf32> -> vector<256x128xf32>
    %c0_4 = arith.constant 0 : index
    %c0_5 = arith.constant 0 : index
    %6 = vector.load %arg5[%c0_4, %c0_5] : memref<1x128xf32, #tpu.memory_space<vmem>>, vector<1x128xf32>
    %7 = vector.broadcast %6 : vector<1x128xf32> to vector<256x128xf32>
    %8 = arith.addf %5, %7 : vector<256x128xf32>
    %9 = vector.shape_cast %8 : vector<256x128xf32> to vector<1x16x16x128xf32>
    %10 = arith.truncf %9 : vector<1x16x16x128xf32> to vector<1x16x16x128xbf16>
    %c0_6 = arith.constant 0 : index
    %c0_7 = arith.constant 0 : index
    %c0_8 = arith.constant 0 : index
    %c0_9 = arith.constant 0 : index
    %11 = vector.load %arg6[%c0_6, %c0_7, %c0_8, %c0_9] : memref<1x16x16x128xbf16, #tpu.memory_space<vmem>>, vector<1x16x16x128xbf16>
    tpu.vector_store %arg6[%c0_6, %c0_7, %c0_8, %c0_9], %10 {strides = array<i32>} : memref<1x16x16x128xbf16, #tpu.memory_space<vmem>>, vector<1x16x16x128xbf16>,
    return
  }
  func.func @transform_0(%arg0: i32, %arg1: i32) -> (i32, i32, i32, i32) {
    %c0_i32 = arith.constant 0 : i32
    %c0_i32_0 = arith.constant 0 : i32
    %c0_i32_1 = arith.constant 0 : i32
    %c0_i32_2 = arith.constant 0 : i32
    return %arg0, %c0_i32, %c0_i32_0, %c0_i32_1 : i32, i32, i32, i32
  }
  func.func @transform_1(%arg0: i32, %arg1: i32) -> (i32, i32) {
    %c0_i32 = arith.constant 0 : i32
    %c0_i32_0 = arith.constant 0 : i32
    %c0_i32_1 = arith.constant 0 : i32
    return %c0_i32, %c0_i32_0 : i32, i32
  }
  func.func @transform_2(%arg0: i32, %arg1: i32) -> (i32, i32) {
    %c0_i32 = arith.constant 0 : i32
    %c0_i32_0 = arith.constant 0 : i32
    return %c0_i32, %arg1 : i32, i32
  }
  func.func @transform_3(%arg0: i32, %arg1: i32) -> (i32, i32) {
    %c0_i32 = arith.constant 0 : i32
    %c0_i32_0 = arith.constant 0 : i32
    return %c0_i32, %arg1 : i32, i32
  }
  func.func @transform_4(%arg0: i32, %arg1: i32) -> (i32, i32, i32, i32) {
    %c0_i32 = arith.constant 0 : i32
    %c0_i32_0 = arith.constant 0 : i32
    %c0_i32_1 = arith.constant 0 : i32
    return %arg0, %c0_i32, %c0_i32_0, %arg1 : i32, i32, i32, i32
  }
}

</mosaic_0001>

<llo_original>
// kernel: depthwise_separable_conv.1
$region0: #{depthwise_separable_conv.1}
  #allocation0 [shape = 'u32[]', space=smem, size = 0x4, offset = 0x4, fixed_abs, tag = 'smem constant byte address 0x4 - core index']
  #allocation1 [shape = 'u32[72,128]{1,0:T(1,128)}', space=vmem, size = 0x9000, scoped, tag = 'internal scratch']
  #allocation2 [shape = 'bf16[256,256]{1,0:T(8,128)(2,1)}', space=vmem, size = 0x20000, scoped, tag = 'scratch operand']
  %s0 = inlined_call_operand.vmem [shape: bf16[2,18,18,128], index: 0, kind: input, shape index: {}]
  %s1 = inlined_call_operand.vmem [shape: f32[9,128], index: 1, kind: input, shape index: {}]
  %s2 = inlined_call_operand.vmem [shape: bf16[256,128], index: 2, kind: input, shape index: {}]
  %s3 = inlined_call_operand.vmem [shape: f32[1,128], index: 3, kind: input, shape index: {}]
  %s4 = inlined_call_operand.vmem [shape: bf16[2,16,16,128], index: 4, kind: output, shape index: {}]
  %s5 = sld [smem:[#allocation0]]
  $region53: #{depthwise_separable_conv.1} parent=0
    _
  %s7 = ssub.s32 1, %s5
  %s8 = scalar_select 0, %s7, %s5
  loop: start=0, step=1, limit=4
  $region2: #{depthwise_separable_conv.1} parent=0 // loop_pre_header
    _
  $region3: #{depthwise_separable_conv.1} parent=0 // loop_header
    %s10 = sphi 0, %s14
    %p11 = scmp.ge.s32.totalorder %s10, 4
    %s17 = sphi 0, %s29
    %s18 = sphi 0, %s25
    %s19 = sphi 0, %s17
    %s20 = sphi 0, %s18
    %s21 = sphi 0, %s19
    %s22 = sphi 0, %s20
    %s32 = sphi 0, %s34
    %s35 = sphi 0, %s32
    %s36 = sphi 0, %s35
    %s52 = sphi 0, %s36
    %s56 = sphi 0, %s56
    %s58 = sphi 0, %s56
    %s59 = sphi 0, %s58
    %s73 = sphi 0, %s59
    %s79 = sphi 0, %s81
    %s82 = sphi 0, %s79
    %s83 = sphi 0, %s82
    %s99 = sphi 0, %s83
    %s105 = sphi 0, %s107
    %s108 = sphi 0, %s105
    %s109 = sphi 0, %s108
    %s125 = sphi 0, %s109
    %s133 = sphi 0, %s135
    %s136 = sphi 0, %s133
    %s137 = sphi 0, %s136
    %s153 = sphi 0, %s137
  $region4: #{depthwise_separable_conv.1} parent=0 // loop_header_branch
    %13 = sbr.rel (%p11) target = $region8
  $region5: #{depthwise_separable_conv.1} parent=0 // loop_body
    %s15 = ssub.s32 %s10, 1
    %s16 = ssub.s32 %s10, 2
    %s23 = sadd.s32 1, %s18
    %p24 = scmp.ge.s32.totalorder %s23, 1
    %s25 = scalar_select %p24, 0, %s23
    %s26 = sadd.s32 1, %s17
    %s27 = scalar_select %p24, %s26, %s17
    %p28 = scmp.ge.s32.totalorder %s27, 2
    %s29 = scalar_select %p28, 0, %s27
    %s30 = ssub.s32 %s17, %s29
    %p31 = scmp.eq.s32.totalorder %s30, 0
    %s33 = sadd.s32 %s32, 1
    %s34 = scalar_select %p31, %s32, %s33
    %p37 = pneg %p31
    %p38 = scmp.eq.s32.totalorder %s10, 1
    %p39 = por %p37, %p38
    %p40 = scmp.ne.s32.totalorder %s32, %s35
    %p41 = scmp.eq.s32.totalorder %s10, 0
    %p42 = por %p40, %p41
    %p43 = scmp.ne.s32.totalorder %s32, %s35
    %p44 = scmp.eq.s32.totalorder %s15, 1
    %p45 = por %p43, %p44
    %p46 = scmp.ne.s32.totalorder %s35, %s36
    %p47 = scmp.eq.s32.totalorder %s15, 0
    %p48 = por %p46, %p47
    %p49 = scmp.ne.s32.totalorder %s35, %s36
    %p50 = scmp.eq.s32.totalorder %s16, 1
    %p51 = por %p49, %p50
    %p53 = scmp.ne.s32.totalorder %s36, %s52
    %p54 = scmp.eq.s32.totalorder %s16, 0
    %p55 = por %p53, %p54
    %s57 = sadd.s32 %s56, 1
    %p60 = scmp.eq.s32.totalorder %s10, 1
    %p61 = scmp.ne.s32.totalorder %s56, %s58
    %p62 = scmp.eq.s32.totalorder %s10, 0
    %p63 = por %p61, %p62
    %p64 = scmp.ne.s32.totalorder %s56, %s58
    %p65 = scmp.eq.s32.totalorder %s15, 1
    %p66 = por %p64, %p65
    %p67 = scmp.ne.s32.totalorder %s58, %s59
    %p68 = scmp.eq.s32.totalorder %s15, 0
    %p69 = por %p67, %p68
    %p70 = scmp.ne.s32.totalorder %s58, %s59
    %p71 = scmp.eq.s32.totalorder %s16, 1
    %p72 = por %p70, %p71
    %p74 = scmp.ne.s32.totalorder %s59, %s73
    %p75 = scmp.eq.s32.totalorder %s16, 0
    %p76 = por %p74, %p75
    %s77 = ssub.s32 %s18, %s25
    %p78 = scmp.eq.s32.totalorder %s77, 0
    %s80 = sadd.s32 %s79, 1
    %s81 = scalar_select %p78, %s79, %s80
    %p84 = pneg %p78
    %p85 = scmp.eq.s32.totalorder %s10, 1
    %p86 = por %p84, %p85
    %p87 = scmp.ne.s32.totalorder %s79, %s82
    %p88 = scmp.eq.s32.totalorder %s10, 0
    %p89 = por %p87, %p88
    %p90 = scmp.ne.s32.totalorder %s79, %s82
    %p91 = scmp.eq.s32.totalorder %s15, 1
    %p92 = por %p90, %p91
    %p93 = scmp.ne.s32.totalorder %s82, %s83
    %p94 = scmp.eq.s32.totalorder %s15, 0
    %p95 = por %p93, %p94
    %p96 = scmp.ne.s32.totalorder %s82, %s83
    %p97 = scmp.eq.s32.totalorder %s16, 1
    %p98 = por %p96, %p97
    %p100 = scmp.ne.s32.totalorder %s83, %s99
    %p101 = scmp.eq.s32.totalorder %s16, 0
    %p102 = por %p100, %p101
    %s103 = ssub.s32 %s18, %s25
    %p104 = scmp.eq.s32.totalorder %s103, 0
    %s106 = sadd.s32 %s105, 1
    %s107 = scalar_select %p104, %s105, %s106
    %p110 = pneg %p104
    %p111 = scmp.eq.s32.totalorder %s10, 1
    %p112 = por %p110, %p111
    %p113 = scmp.ne.s32.totalorder %s105, %s108
    %p114 = scmp.eq.s32.totalorder %s10, 0
    %p115 = por %p113, %p114
    %p116 = scmp.ne.s32.totalorder %s105, %s108
    %p117 = scmp.eq.s32.totalorder %s15, 1
    %p118 = por %p116, %p117
    %p119 = scmp.ne.s32.totalorder %s108, %s109
    %p120 = scmp.eq.s32.totalorder %s15, 0
    %p121 = por %p119, %p120
    %p122 = scmp.ne.s32.totalorder %s108, %s109
    %p123 = scmp.eq.s32.totalorder %s16, 1
    %p124 = por %p122, %p123
    %p126 = scmp.ne.s32.totalorder %s109, %s125
    %p127 = scmp.eq.s32.totalorder %s16, 0
    %p128 = por %p126, %p127
    %s129 = ssub.s32 %s17, %s29
    %s130 = ssub.s32 %s18, %s25
    %s131 = sor.u32 %s129, %s130
    %p132 = scmp.eq.s32.totalorder %s131, 0
    %s134 = sadd.s32 %s133, 1
    %s135 = scalar_select %p132, %s133, %s134
    %p138 = pneg %p132
    %p139 = scmp.eq.s32.totalorder %s10, 1
    %p140 = por %p138, %p139
    %p141 = scmp.ne.s32.totalorder %s133, %s136
    %p142 = scmp.eq.s32.totalorder %s10, 0
    %p143 = por %p141, %p142
    %p144 = scmp.ne.s32.totalorder %s133, %s136
    %p145 = scmp.eq.s32.totalorder %s15, 1
    %p146 = por %p144, %p145
    %p147 = scmp.ne.s32.totalorder %s136, %s137
    %p148 = scmp.eq.s32.totalorder %s15, 0
    %p149 = por %p147, %p148
    %p150 = scmp.ne.s32.totalorder %s136, %s137
    %p151 = scmp.eq.s32.totalorder %s16, 1
    %p152 = por %p150, %p151
    %p154 = scmp.ne.s32.totalorder %s137, %s153
    %p155 = scmp.eq.s32.totalorder %s16, 0
    %p156 = por %p154, %p155
    %p157 = scmp.le.s32.totalorder 1, %s10
    %p158 = scmp.lt.s32.totalorder %s10, 3
    %p159 = pnand %p157, %p158
    %p160 = pneg %p159
    // Predicated region
    $region9: #{depthwise_separable_conv.1} parent=5 // pred_check
      _
    $region10: #{depthwise_separable_conv.1} parent=5 // pred_check_branch
      %162 = sbr.rel (%p159) target = $region12
    $region11: #{depthwise_separable_conv.1} parent=5 // pred_region
      %s163 = ssub.s32 %s10, 1
      // Predicated region
      $region13: #{depthwise_separable_conv.1} parent=11 // pred_check
        %p164 = pneg %p69
      $region14: #{depthwise_separable_conv.1} parent=11 // pred_check_branch
        %166 = sbr.rel (%p164) target = $region16
      $region15: #{depthwise_separable_conv.1} parent=11 // pred_region
        _
      $region16: #{depthwise_separable_conv.1} parent=11 // pred_fallthru
        _
      // Predicated region
      $region17: #{depthwise_separable_conv.1} parent=11 // pred_check
        %p167 = pneg %p95
      $region18: #{depthwise_separable_conv.1} parent=11 // pred_check_branch
        %169 = sbr.rel (%p167) target = $region20
      $region19: #{depthwise_separable_conv.1} parent=11 // pred_region
        %p170 = scmp.lt.s32.totalorder %s20, 0
        %s171 = scalar_select %p170, %s20, 0
        %s172 = smul.addr %s171, 4
        %s173 = scalar_lea.vmem %s2, %s172
      $region20: #{depthwise_separable_conv.1} parent=11 // pred_fallthru
        _
      // Predicated region
      $region21: #{depthwise_separable_conv.1} parent=11 // pred_check
        %p174 = pneg %p121
      $region22: #{depthwise_separable_conv.1} parent=11 // pred_check_branch
        %176 = sbr.rel (%p174) target = $region24
      $region23: #{depthwise_separable_conv.1} parent=11 // pred_region
        %p177 = scmp.lt.s32.totalorder %s20, 0
        %s178 = scalar_select %p177, %s20, 0
        %s179 = scalar_lea.vmem %s3, %s178
      $region24: #{depthwise_separable_conv.1} parent=11 // pred_fallthru
        _
    $region12: #{depthwise_separable_conv.1} parent=5 // pred_fallthru
      _
    %p180 = scmp.lt.s32.totalorder %s10, 2
    // Predicated region
    $region25: #{depthwise_separable_conv.1} parent=5 // pred_check
      %p181 = pneg %p180
    $region26: #{depthwise_separable_conv.1} parent=5 // pred_check_branch
      %183 = sbr.rel (%p181) target = $region28
    $region27: #{depthwise_separable_conv.1} parent=5 // pred_region
      // Predicated region
      $region29: #{depthwise_separable_conv.1} parent=27 // pred_check
        %p184 = pneg %p42
      $region30: #{depthwise_separable_conv.1} parent=27 // pred_check_branch
        %186 = sbr.rel (%p184) target = $region32
      $region31: #{depthwise_separable_conv.1} parent=27 // pred_region
        %p187 = scmp.lt.s32.totalorder %s17, 1
        %s188 = scalar_select %p187, %s17, 1
        %s189 = smul.addr %s188, 54
        %s190 = smul.addr %s189, 4
        %s191 = scalar_lea.vmem %s0, %s190
      $region32: #{depthwise_separable_conv.1} parent=27 // pred_fallthru
        _
    $region28: #{depthwise_separable_conv.1} parent=5 // pred_fallthru
      _
    %p192 = scmp.le.s32.totalorder 1, %s10
    %p193 = scmp.lt.s32.totalorder %s10, 3
    %p194 = pnand %p192, %p193
    %p195 = pneg %p194
    // Predicated region
    $region33: #{depthwise_separable_conv.1} parent=5 // pred_check
      _
    $region34: #{depthwise_separable_conv.1} parent=5 // pred_check_branch
      %197 = sbr.rel (%p194) target = $region36
    $region35: #{depthwise_separable_conv.1} parent=5 // pred_region
      %s198 = ssub.s32 %s10, 1
      %p199 = scmp.lt.s32.totalorder %s19, 1
      %s200 = scalar_select %p199, %s19, 1
      %s201 = smul.addr %s200, 54
      %s202 = smul.addr %s201, 4
      %s203 = scalar_lea.vmem %s0, %s202
      %p204 = pneg %p48
      %p205 = pneg %p45
      %p206 = pneg %p69
      %p207 = pneg %p66
      %p208 = scmp.lt.s32.totalorder %s20, 0
      %s209 = scalar_select %p208, %s20, 0
      %s210 = smul.addr %s209, 4
      %s211 = scalar_lea.vmem %s2, %s210
      %p212 = pneg %p95
      %p213 = pneg %p92
      %p214 = scmp.lt.s32.totalorder %s20, 0
      %s215 = scalar_select %p214, %s20, 0
      %s216 = scalar_lea.vmem %s3, %s215
      %p217 = pneg %p121
      %p218 = pneg %p118
      %p219 = pneg %p149
      %p220 = pneg %p146
      %p221 = scmp.lt.s32.totalorder %s19, 1
      %s222 = scalar_select %p221, %s19, 1
      %p223 = scmp.lt.s32.totalorder %s20, 0
      %s224 = scalar_select %p223, %s20, 0
      %s225 = smul.addr %s222, 32
      %s226 = sadd.s32 %s224, %s225
      %s227 = smul.addr %s226, 4
      %s228 = scalar_lea.vmem %s4, %s227
      %p229 = scmp.lt.s32.totalorder %s19, 1
      %s230 = scalar_select %p229, %s19, 1
      %s231 = smul.addr %s230, 54
      %s232 = smul.addr %s231, 4
      %s233 = scalar_lea.vmem %s0, %s232
      %p234 = scmp.lt.s32.totalorder %s20, 0
      %s235 = scalar_select %p234, %s20, 0
      %s236 = smul.addr %s235, 4
      %s237 = scalar_lea.vmem %s2, %s236
      %p238 = scmp.lt.s32.totalorder %s20, 0
      %s239 = scalar_select %p238, %s20, 0
      %s240 = scalar_lea.vmem %s3, %s239
      %p241 = scmp.lt.s32.totalorder %s19, 1
      %s242 = scalar_select %p241, %s19, 1
      %p243 = scmp.lt.s32.totalorder %s20, 0
      %s244 = scalar_select %p243, %s20, 0
      %s245 = smul.addr %s242, 32
      %s246 = sadd.s32 %s244, %s245
      %s247 = smul.addr %s246, 4
      %s248 = scalar_lea.vmem %s4, %s247
      %p249 = scmp.eq.s32.totalorder %s20, 0
      // Predicated region
      $region37: #{depthwise_separable_conv.1} parent=35 // pred_check
        %p250 = pneg %p249
      $region38: #{depthwise_separable_conv.1} parent=35 // pred_check_branch
        %252 = sbr.rel (%p250) target = $region40
      $region39: #{depthwise_separable_conv.1} parent=35 // pred_region
        %v253 = vld [vmem:[%s1] sm:$0xff]
        %v254 = vld [vmem:[%s1 + $0x8] sm:$0x1]
        %v255 = vld [vmem:[%s233] sm:$0xf]
        %v256 = vld [vmem:[%s233 + $0x4] sm:$0xf]
        %v257 = vld [vmem:[%s233 + $0xc] sm:$0xf]
        %v258 = vld [vmem:[%s233 + $0x10] sm:$0xf]
        %v259 = vld [vmem:[%s233 + $0x18] sm:$0xf]
        %v260 = vld [vmem:[%s233 + $0x1c] sm:$0xf]
        %v261 = vld [vmem:[%s233 + $0x24] sm:$0xf]
        %v262 = vld [vmem:[%s233 + $0x28] sm:$0xf]
        %v263 = vld [vmem:[%s233 + $0x30] sm:$0xf]
        %v264 = vld [vmem:[%s233 + $0x34] sm:$0xf]
        %v265 = vld [vmem:[%s233 + $0x3c] sm:$0xf]
        %v266 = vld [vmem:[%s233 + $0x40] sm:$0xf]
        %v267 = vld [vmem:[%s233 + $0x48] sm:$0xf]
        %v268 = vld [vmem:[%s233 + $0x4c] sm:$0xf]
        %v269 = vld [vmem:[%s233 + $0x54] sm:$0xf]
        %v270 = vld [vmem:[%s233 + $0x58] sm:$0xf]
        %v271 = vld [vmem:[%s233 + $0x60] sm:$0xf]
        %v272 = vld [vmem:[%s233 + $0x64] sm:$0xf]
        %v273 = vld [vmem:[%s233 + $0x6c] sm:$0xf]
        %v274 = vld [vmem:[%s233 + $0x70] sm:$0xf]
        %v275 = vld [vmem:[%s233 + $0x78] sm:$0xf]
        %v276 = vld [vmem:[%s233 + $0x7c] sm:$0xf]
        %v277 = vld [vmem:[%s233 + $0x84] sm:$0xf]
        %v278 = vld [vmem:[%s233 + $0x88] sm:$0xf]
        %v279 = vld [vmem:[%s233 + $0x90] sm:$0xf]
        %v280 = vld [vmem:[%s233 + $0x94] sm:$0xf]
        %v281 = vld [vmem:[%s233 + $0x9c] sm:$0xf]
        %v282 = vld [vmem:[%s233 + $0xa0] sm:$0xf]
        %v283 = vld [vmem:[%s233 + $0xa8] sm:$0xf]
        %v284 = vld [vmem:[%s233 + $0xac] sm:$0xf]
        %v285 = vld [vmem:[%s233 + $0xb4] sm:$0xf]
        %v286 = vld [vmem:[%s233 + $0xb8] sm:$0xf]
        %v287 = vunpack.c.l.bf16 %v255
        %v288 = vunpack.c.l.bf16 %v256
        %v289 = vunpack.c.l.bf16 %v257
        %v290 = vunpack.c.l.bf16 %v258
        %v291 = vunpack.c.l.bf16 %v259
        %v292 = vunpack.c.l.bf16 %v260
        %v293 = vunpack.c.l.bf16 %v261
        %v294 = vunpack.c.l.bf16 %v262
        %v295 = vunpack.c.l.bf16 %v263
        %v296 = vunpack.c.l.bf16 %v264
        %v297 = vunpack.c.l.bf16 %v265
        %v298 = vunpack.c.l.bf16 %v266
        %v299 = vunpack.c.l.bf16 %v267
        %v300 = vunpack.c.l.bf16 %v268
        %v301 = vunpack.c.l.bf16 %v269
        %v302 = vunpack.c.l.bf16 %v270
        %v303 = vunpack.c.l.bf16 %v271
        %v304 = vunpack.c.l.bf16 %v272
        %v305 = vunpack.c.l.bf16 %v273
        %v306 = vunpack.c.l.bf16 %v274
        %v307 = vunpack.c.l.bf16 %v275
        %v308 = vunpack.c.l.bf16 %v276
        %v309 = vunpack.c.l.bf16 %v277
        %v310 = vunpack.c.l.bf16 %v278
        %v311 = vunpack.c.l.bf16 %v279
        %v312 = vunpack.c.l.bf16 %v280
        %v313 = vunpack.c.l.bf16 %v281
        %v314 = vunpack.c.l.bf16 %v282
        %v315 = vunpack.c.l.bf16 %v283
        %v316 = vunpack.c.l.bf16 %v284
        %v317 = vunpack.c.l.bf16 %v285
        %v318 = vunpack.c.l.bf16 %v286
        %v319 = vperm.slane %v253, 0
        %v320 = vmul.f32 %v287, %v319
        %v321 = vmul.f32 %v288, %v319
        %v322 = vmul.f32 %v289, %v319
        %v323 = vmul.f32 %v290, %v319
        %v324 = vmul.f32 %v291, %v319
        %v325 = vmul.f32 %v292, %v319
        %v326 = vmul.f32 %v293, %v319
        %v327 = vmul.f32 %v294, %v319
        %v328 = vmul.f32 %v295, %v319
        %v329 = vmul.f32 %v296, %v319
        %v330 = vmul.f32 %v297, %v319
        %v331 = vmul.f32 %v298, %v319
        %v332 = vmul.f32 %v299, %v319
        %v333 = vmul.f32 %v300, %v319
        %v334 = vmul.f32 %v301, %v319
        %v335 = vmul.f32 %v302, %v319
        %v336 = vmul.f32 %v303, %v319
        %v337 = vmul.f32 %v304, %v319
        %v338 = vmul.f32 %v305, %v319
        %v339 = vmul.f32 %v306, %v319
        %v340 = vmul.f32 %v307, %v319
        %v341 = vmul.f32 %v308, %v319
        %v342 = vmul.f32 %v309, %v319
        %v343 = vmul.f32 %v310, %v319
        %v344 = vmul.f32 %v311, %v319
        %v345 = vmul.f32 %v312, %v319
        %v346 = vmul.f32 %v313, %v319
        %v347 = vmul.f32 %v314, %v319
        %v348 = vmul.f32 %v315, %v319
        %v349 = vmul.f32 %v316, %v319
        %v350 = vmul.f32 %v317, %v319
        %v351 = vmul.f32 %v318, %v319
        %v352 = vld [vmem:[%s233 + $0x8] sm:$0x1]
        %v353 = vld [vmem:[%s233 + $0x14] sm:$0x1]
        %v354 = vld [vmem:[%s233 + $0x20] sm:$0x1]
        %v355 = vld [vmem:[%s233 + $0x2c] sm:$0x1]
        %v356 = vld [vmem:[%s233 + $0x38] sm:$0x1]
        %v357 = vld [vmem:[%s233 + $0x44] sm:$0x1]
        %v358 = vld [vmem:[%s233 + $0x50] sm:$0x1]
        %v359 = vld [vmem:[%s233 + $0x5c] sm:$0x1]
        %v360 = vld [vmem:[%s233 + $0x68] sm:$0x1]
        %v361 = vld [vmem:[%s233 + $0x74] sm:$0x1]
        %v362 = vld [vmem:[%s233 + $0x80] sm:$0x1]
        %v363 = vld [vmem:[%s233 + $0x8c] sm:$0x1]
        %v364 = vld [vmem:[%s233 + $0x98] sm:$0x1]
        %v365 = vld [vmem:[%s233 + $0xa4] sm:$0x1]
        %v366 = vld [vmem:[%s233 + $0xb0] sm:$0x1]
        %v367 = vld [vmem:[%s233 + $0xbc] sm:$0x1]
        %v368 = vunpack.c.l.bf16 %v352
        %v369 = vunpack.c.l.bf16 %v353
        %v370 = vunpack.c.l.bf16 %v354
        %v371 = vunpack.c.l.bf16 %v355
        %v372 = vunpack.c.l.bf16 %v356
        %v373 = vunpack.c.l.bf16 %v357
        %v374 = vunpack.c.l.bf16 %v358
        %v375 = vunpack.c.l.bf16 %v359
        %v376 = vunpack.c.l.bf16 %v360
        %v377 = vunpack.c.l.bf16 %v361
        %v378 = vunpack.c.l.bf16 %v362
        %v379 = vunpack.c.l.bf16 %v363
        %v380 = vunpack.c.l.bf16 %v364
        %v381 = vunpack.c.l.bf16 %v365
        %v382 = vunpack.c.l.bf16 %v366
        %v383 = vunpack.c.l.bf16 %v367
        %v384 = vperm.slane %v253, 1
        %v385 = vmul.f32 %v287, %v384
        %v386 = vmul.f32 %v288, %v384
        %v387 = vmul.f32 %v368, %v384
        %v388 = vmul.f32 %v289, %v384
        %v389 = vmul.f32 %v290, %v384
        %v390 = vmul.f32 %v369, %v384
        %v391 = vmul.f32 %v291, %v384
        %v392 = vmul.f32 %v292, %v384
        %v393 = vmul.f32 %v370, %v384
        %v394 = vmul.f32 %v293, %v384
        %v395 = vmul.f32 %v294, %v384
        %v396 = vmul.f32 %v371, %v384
        %v397 = vmul.f32 %v295, %v384
        %v398 = vmul.f32 %v296, %v384
        %v399 = vmul.f32 %v372, %v384
        %v400 = vmul.f32 %v297, %v384
        %v401 = vmul.f32 %v298, %v384
        %v402 = vmul.f32 %v373, %v384
        %v403 = vmul.f32 %v299, %v384
        %v404 = vmul.f32 %v300, %v384
        %v405 = vmul.f32 %v374, %v384
        %v406 = vmul.f32 %v301, %v384
        %v407 = vmul.f32 %v302, %v384
        %v408 = vmul.f32 %v375, %v384
        %v409 = vmul.f32 %v303, %v384
        %v410 = vmul.f32 %v304, %v384
        %v411 = vmul.f32 %v376, %v384
        %v412 = vmul.f32 %v305, %v384
        %v413 = vmul.f32 %v306, %v384
        %v414 = vmul.f32 %v377, %v384
        %v415 = vmul.f32 %v307, %v384
        %v416 = vmul.f32 %v308, %v384
        %v417 = vmul.f32 %v378, %v384
        %v418 = vmul.f32 %v309, %v384
        %v419 = vmul.f32 %v310, %v384
        %v420 = vmul.f32 %v379, %v384
        %v421 = vmul.f32 %v311, %v384
        %v422 = vmul.f32 %v312, %v384
        %v423 = vmul.f32 %v380, %v384
        %v424 = vmul.f32 %v313, %v384
        %v425 = vmul.f32 %v314, %v384
        %v426 = vmul.f32 %v381, %v384
        %v427 = vmul.f32 %v315, %v384
        %v428 = vmul.f32 %v316, %v384
        %v429 = vmul.f32 %v382, %v384
        %v430 = vmul.f32 %v317, %v384
        %v431 = vmul.f32 %v318, %v384
        %v432 = vmul.f32 %v383, %v384
        %vm481 = vcmask 1046528
        %v482 = vrot.slane %v385, 1
        %v483 = vrot.slane %v386, 1
        %v484 = vsel %vm481, %v482, %v483
        %v485 = vrot.slane %v387, 1
        %v486 = vsel %vm481, %v483, %v485
        %v487 = vrot.slane %v388, 1
        %v488 = vrot.slane %v389, 1
        %v489 = vsel %vm481, %v487, %v488
        %v490 = vrot.slane %v390, 1
        %v491 = vsel %vm481, %v488, %v490
        %v492 = vrot.slane %v391, 1
        %v493 = vrot.slane %v392, 1
        %v494 = vsel %vm481, %v492, %v493
        %v495 = vrot.slane %v393, 1
        %v496 = vsel %vm481, %v493, %v495
        %v497 = vrot.slane %v394, 1
        %v498 = vrot.slane %v395, 1
        %v499 = vsel %vm481, %v497, %v498
        %v500 = vrot.slane %v396, 1
        %v501 = vsel %vm481, %v498, %v500
        %v502 = vrot.slane %v397, 1
        %v503 = vrot.slane %v398, 1
        %v504 = vsel %vm481, %v502, %v503
        %v505 = vrot.slane %v399, 1
        %v506 = vsel %vm481, %v503, %v505
        %v507 = vrot.slane %v400, 1
        %v508 = vrot.slane %v401, 1
        %v509 = vsel %vm481, %v507, %v508
        %v510 = vrot.slane %v402, 1
        %v511 = vsel %vm481, %v508, %v510
        %v512 = vrot.slane %v403, 1
        %v513 = vrot.slane %v404, 1
        %v514 = vsel %vm481, %v512, %v513
        %v515 = vrot.slane %v405, 1
        %v516 = vsel %vm481, %v513, %v515
        %v517 = vrot.slane %v406, 1
        %v518 = vrot.slane %v407, 1
        %v519 = vsel %vm481, %v517, %v518
        %v520 = vrot.slane %v408, 1
        %v521 = vsel %vm481, %v518, %v520
        %v522 = vrot.slane %v409, 1
        %v523 = vrot.slane %v410, 1
        %v524 = vsel %vm481, %v522, %v523
        %v525 = vrot.slane %v411, 1
        %v526 = vsel %vm481, %v523, %v525
        %v527 = vrot.slane %v412, 1
        %v528 = vrot.slane %v413, 1
        %v529 = vsel %vm481, %v527, %v528
        %v530 = vrot.slane %v414, 1
        %v531 = vsel %vm481, %v528, %v530
        %v532 = vrot.slane %v415, 1
        %v533 = vrot.slane %v416, 1
        %v534 = vsel %vm481, %v532, %v533
        %v535 = vrot.slane %v417, 1
        %v536 = vsel %vm481, %v533, %v535
        %v537 = vrot.slane %v418, 1
        %v538 = vrot.slane %v419, 1
        %v539 = vsel %vm481, %v537, %v538
        %v540 = vrot.slane %v420, 1
        %v541 = vsel %vm481, %v538, %v540
        %v542 = vrot.slane %v421, 1
        %v543 = vrot.slane %v422, 1
        %v544 = vsel %vm481, %v542, %v543
        %v545 = vrot.slane %v423, 1
        %v546 = vsel %vm481, %v543, %v545
        %v547 = vrot.slane %v424, 1
        %v548 = vrot.slane %v425, 1
        %v549 = vsel %vm481, %v547, %v548
        %v550 = vrot.slane %v426, 1
        %v551 = vsel %vm481, %v548, %v550
        %v552 = vrot.slane %v427, 1
        %v553 = vrot.slane %v428, 1
        %v554 = vsel %vm481, %v552, %v553
        %v555 = vrot.slane %v429, 1
        %v556 = vsel %vm481, %v553, %v555
        %v557 = vrot.slane %v430, 1
        %v558 = vrot.slane %v431, 1
        %v559 = vsel %vm481, %v557, %v558
        %v560 = vrot.slane %v432, 1
        %v561 = vsel %vm481, %v558, %v560
        %v594 = vadd.f32 %v320, %v484
        %v595 = vadd.f32 %v321, %v486
        %v596 = vadd.f32 %v322, %v489
        %v597 = vadd.f32 %v323, %v491
        %v598 = vadd.f32 %v324, %v494
        %v599 = vadd.f32 %v325, %v496
        %v600 = vadd.f32 %v326, %v499
        %v601 = vadd.f32 %v327, %v501
        %v602 = vadd.f32 %v328, %v504
        %v603 = vadd.f32 %v329, %v506
        %v604 = vadd.f32 %v330, %v509
        %v605 = vadd.f32 %v331, %v511
        %v606 = vadd.f32 %v332, %v514
        %v607 = vadd.f32 %v333, %v516
        %v608 = vadd.f32 %v334, %v519
        %v609 = vadd.f32 %v335, %v521
        %v610 = vadd.f32 %v336, %v524
        %v611 = vadd.f32 %v337, %v526
        %v612 = vadd.f32 %v338, %v529
        %v613 = vadd.f32 %v339, %v531
        %v614 = vadd.f32 %v340, %v534
        %v615 = vadd.f32 %v341, %v536
        %v616 = vadd.f32 %v342, %v539
        %v617 = vadd.f32 %v343, %v541
        %v618 = vadd.f32 %v344, %v544
        %v619 = vadd.f32 %v345, %v546
        %v620 = vadd.f32 %v346, %v549
        %v621 = vadd.f32 %v347, %v551
        %v622 = vadd.f32 %v348, %v554
        %v623 = vadd.f32 %v349, %v556
        %v624 = vadd.f32 %v350, %v559
        %v625 = vadd.f32 %v351, %v561
        %v626 = vld [vmem:[%s233] sm:$0xe]
        %v627 = vld [vmem:[%s233 + $0xc] sm:$0xe]
        %v628 = vld [vmem:[%s233 + $0x18] sm:$0xe]
        %v629 = vld [vmem:[%s233 + $0x24] sm:$0xe]
        %v630 = vld [vmem:[%s233 + $0x30] sm:$0xe]
        %v631 = vld [vmem:[%s233 + $0x3c] sm:$0xe]
        %v632 = vld [vmem:[%s233 + $0x48] sm:$0xe]
        %v633 = vld [vmem:[%s233 + $0x54] sm:$0xe]
        %v634 = vld [vmem:[%s233 + $0x60] sm:$0xe]
        %v635 = vld [vmem:[%s233 + $0x6c] sm:$0xe]
        %v636 = vld [vmem:[%s233 + $0x78] sm:$0xe]
        %v637 = vld [vmem:[%s233 + $0x84] sm:$0xe]
        %v638 = vld [vmem:[%s233 + $0x90] sm:$0xe]
        %v639 = vld [vmem:[%s233 + $0x9c] sm:$0xe]
        %v640 = vld [vmem:[%s233 + $0xa8] sm:$0xe]
        %v641 = vld [vmem:[%s233 + $0xb4] sm:$0xe]
        %v642 = vunpack.c.l.bf16 %v626
        %v643 = vunpack.c.l.bf16 %v627
        %v644 = vunpack.c.l.bf16 %v628
        %v645 = vunpack.c.l.bf16 %v629
        %v646 = vunpack.c.l.bf16 %v630
        %v647 = vunpack.c.l.bf16 %v631
        %v648 = vunpack.c.l.bf16 %v632
        %v649 = vunpack.c.l.bf16 %v633
        %v650 = vunpack.c.l.bf16 %v634
        %v651 = vunpack.c.l.bf16 %v635
        %v652 = vunpack.c.l.bf16 %v636
        %v653 = vunpack.c.l.bf16 %v637
        %v654 = vunpack.c.l.bf16 %v638
        %v655 = vunpack.c.l.bf16 %v639
        %v656 = vunpack.c.l.bf16 %v640
        %v657 = vunpack.c.l.bf16 %v641
        %v658 = vperm.slane %v253, 2
        %v659 = vmul.f32 %v642, %v658
        %v660 = vmul.f32 %v288, %v658
        %v661 = vmul.f32 %v368, %v658
        %v662 = vmul.f32 %v643, %v658
        %v663 = vmul.f32 %v290, %v658
        %v664 = vmul.f32 %v369, %v658
        %v665 = vmul.f32 %v644, %v658
        %v666 = vmul.f32 %v292, %v658
        %v667 = vmul.f32 %v370, %v658
        %v668 = vmul.f32 %v645, %v658
        %v669 = vmul.f32 %v294, %v658
        %v670 = vmul.f32 %v371, %v658
        %v671 = vmul.f32 %v646, %v658
        %v672 = vmul.f32 %v296, %v658
        %v673 = vmul.f32 %v372, %v658
        %v674 = vmul.f32 %v647, %v658
        %v675 = vmul.f32 %v298, %v658
        %v676 = vmul.f32 %v373, %v658
        %v677 = vmul.f32 %v648, %v658
        %v678 = vmul.f32 %v300, %v658
        %v679 = vmul.f32 %v374, %v658
        %v680 = vmul.f32 %v649, %v658
        %v681 = vmul.f32 %v302, %v658
        %v682 = vmul.f32 %v375, %v658
        %v683 = vmul.f32 %v650, %v658
        %v684 = vmul.f32 %v304, %v658
        %v685 = vmul.f32 %v376, %v658
        %v686 = vmul.f32 %v651, %v658
        %v687 = vmul.f32 %v306, %v658
        %v688 = vmul.f32 %v377, %v658
        %v689 = vmul.f32 %v652, %v658
        %v690 = vmul.f32 %v308, %v658
        %v691 = vmul.f32 %v378, %v658
        %v692 = vmul.f32 %v653, %v658
        %v693 = vmul.f32 %v310, %v658
        %v694 = vmul.f32 %v379, %v658
        %v695 = vmul.f32 %v654, %v658
        %v696 = vmul.f32 %v312, %v658
        %v697 = vmul.f32 %v380, %v658
        %v698 = vmul.f32 %v655, %v658
        %v699 = vmul.f32 %v314, %v658
        %v700 = vmul.f32 %v381, %v658
        %v701 = vmul.f32 %v656, %v658
        %v702 = vmul.f32 %v316, %v658
        %v703 = vmul.f32 %v382, %v658
        %v704 = vmul.f32 %v657, %v658
        %v705 = vmul.f32 %v318, %v658
        %v706 = vmul.f32 %v383, %v658
        %vm755 = vcmask 1045504
        %v756 = vrot.slane %v659, 2
        %v757 = vrot.slane %v660, 2
        %v758 = vsel %vm755, %v756, %v757
        %v759 = vrot.slane %v661, 2
        %v760 = vsel %vm755, %v757, %v759
        %v761 = vrot.slane %v662, 2
        %v762 = vrot.slane %v663, 2
        %v763 = vsel %vm755, %v761, %v762
        %v764 = vrot.slane %v664, 2
        %v765 = vsel %vm755, %v762, %v764
        %v766 = vrot.slane %v665, 2
        %v767 = vrot.slane %v666, 2
        %v768 = vsel %vm755, %v766, %v767
        %v769 = vrot.slane %v667, 2
        %v770 = vsel %vm755, %v767, %v769
        %v771 = vrot.slane %v668, 2
        %v772 = vrot.slane %v669, 2
        %v773 = vsel %vm755, %v771, %v772
        %v774 = vrot.slane %v670, 2
        %v775 = vsel %vm755, %v772, %v774
        %v776 = vrot.slane %v671, 2
        %v777 = vrot.slane %v672, 2
        %v778 = vsel %vm755, %v776, %v777
        %v779 = vrot.slane %v673, 2
        %v780 = vsel %vm755, %v777, %v779
        %v781 = vrot.slane %v674, 2
        %v782 = vrot.slane %v675, 2
        %v783 = vsel %vm755, %v781, %v782
        %v784 = vrot.slane %v676, 2
        %v785 = vsel %vm755, %v782, %v784
        %v786 = vrot.slane %v677, 2
        %v787 = vrot.slane %v678, 2
        %v788 = vsel %vm755, %v786, %v787
        %v789 = vrot.slane %v679, 2
        %v790 = vsel %vm755, %v787, %v789
        %v791 = vrot.slane %v680, 2
        %v792 = vrot.slane %v681, 2
        %v793 = vsel %vm755, %v791, %v792
        %v794 = vrot.slane %v682, 2
        %v795 = vsel %vm755, %v792, %v794
        %v796 = vrot.slane %v683, 2
        %v797 = vrot.slane %v684, 2
        %v798 = vsel %vm755, %v796, %v797
        %v799 = vrot.slane %v685, 2
        %v800 = vsel %vm755, %v797, %v799
        %v801 = vrot.slane %v686, 2
        %v802 = vrot.slane %v687, 2
        %v803 = vsel %vm755, %v801, %v802
        %v804 = vrot.slane %v688, 2
        %v805 = vsel %vm755, %v802, %v804
        %v806 = vrot.slane %v689, 2
        %v807 = vrot.slane %v690, 2
        %v808 = vsel %vm755, %v806, %v807
        %v809 = vrot.slane %v691, 2
        %v810 = vsel %vm755, %v807, %v809
        %v811 = vrot.slane %v692, 2
        %v812 = vrot.slane %v693, 2
        %v813 = vsel %vm755, %v811, %v812
        %v814 = vrot.slane %v694, 2
        %v815 = vsel %vm755, %v812, %v814
        %v816 = vrot.slane %v695, 2
        %v817 = vrot.slane %v696, 2
        %v818 = vsel %vm755, %v816, %v817
        %v819 = vrot.slane %v697, 2
        %v820 = vsel %vm755, %v817, %v819
        %v821 = vrot.slane %v698, 2
        %v822 = vrot.slane %v699, 2
        %v823 = vsel %vm755, %v821, %v822
        %v824 = vrot.slane %v700, 2
        %v825 = vsel %vm755, %v822, %v824
        %v826 = vrot.slane %v701, 2
        %v827 = vrot.slane %v702, 2
        %v828 = vsel %vm755, %v826, %v827
        %v829 = vrot.slane %v703, 2
        %v830 = vsel %vm755, %v827, %v829
        %v831 = vrot.slane %v704, 2
        %v832 = vrot.slane %v705, 2
        %v833 = vsel %vm755, %v831, %v832
        %v834 = vrot.slane %v706, 2
        %v835 = vsel %vm755, %v832, %v834
        %v868 = vadd.f32 %v594, %v758
        %v869 = vadd.f32 %v595, %v760
        %v870 = vadd.f32 %v596, %v763
        %v871 = vadd.f32 %v597, %v765
        %v872 = vadd.f32 %v598, %v768
        %v873 = vadd.f32 %v599, %v770
        %v874 = vadd.f32 %v600, %v773
        %v875 = vadd.f32 %v601, %v775
        %v876 = vadd.f32 %v602, %v778
        %v877 = vadd.f32 %v603, %v780
        %v878 = vadd.f32 %v604, %v783
        %v879 = vadd.f32 %v605, %v785
        %v880 = vadd.f32 %v606, %v788
        %v881 = vadd.f32 %v607, %v790
        %v882 = vadd.f32 %v608, %v793
        %v883 = vadd.f32 %v609, %v795
        %v884 = vadd.f32 %v610, %v798
        %v885 = vadd.f32 %v611, %v800
        %v886 = vadd.f32 %v612, %v803
        %v887 = vadd.f32 %v613, %v805
        %v888 = vadd.f32 %v614, %v808
        %v889 = vadd.f32 %v615, %v810
        %v890 = vadd.f32 %v616, %v813
        %v891 = vadd.f32 %v617, %v815
        %v892 = vadd.f32 %v618, %v818
        %v893 = vadd.f32 %v619, %v820
        %v894 = vadd.f32 %v620, %v823
        %v895 = vadd.f32 %v621, %v825
        %v896 = vadd.f32 %v622, %v828
        %v897 = vadd.f32 %v623, %v830
        %v898 = vadd.f32 %v624, %v833
        %v899 = vadd.f32 %v625, %v835
        %s900 = scalar_lea.vmem %s233, 12
        %v901 = vld [vmem:[%s900] sm:$0xf]
        %v902 = vld [vmem:[%s900 + $0x4] sm:$0xf]
        %v903 = vld [vmem:[%s900 + $0xc] sm:$0xf]
        %v904 = vld [vmem:[%s900 + $0x10] sm:$0xf]
        %v905 = vld [vmem:[%s900 + $0x18] sm:$0xf]
        %v906 = vld [vmem:[%s900 + $0x1c] sm:$0xf]
        %v907 = vld [vmem:[%s900 + $0x24] sm:$0xf]
        %v908 = vld [vmem:[%s900 + $0x28] sm:$0xf]
        %v909 = vld [vmem:[%s900 + $0x30] sm:$0xf]
        %v910 = vld [vmem:[%s900 + $0x34] sm:$0xf]
        %v911 = vld [vmem:[%s900 + $0x3c] sm:$0xf]
        %v912 = vld [vmem:[%s900 + $0x40] sm:$0xf]
        %v913 = vld [vmem:[%s900 + $0x48] sm:$0xf]
        %v914 = vld [vmem:[%s900 + $0x4c] sm:$0xf]
        %v915 = vld [vmem:[%s900 + $0x54] sm:$0xf]
        %v916 = vld [vmem:[%s900 + $0x58] sm:$0xf]
        %v917 = vld [vmem:[%s900 + $0x60] sm:$0xf]
        %v918 = vld [vmem:[%s900 + $0x64] sm:$0xf]
        %v919 = vld [vmem:[%s900 + $0x6c] sm:$0xf]
        %v920 = vld [vmem:[%s900 + $0x70] sm:$0xf]
        %v921 = vld [vmem:[%s900 + $0x78] sm:$0xf]
        %v922 = vld [vmem:[%s900 + $0x7c] sm:$0xf]
        %v923 = vld [vmem:[%s900 + $0x84] sm:$0xf]
        %v924 = vld [vmem:[%s900 + $0x88] sm:$0xf]
        %v925 = vld [vmem:[%s900 + $0x90] sm:$0xf]
        %v926 = vld [vmem:[%s900 + $0x94] sm:$0xf]
        %v927 = vld [vmem:[%s900 + $0x9c] sm:$0xf]
        %v928 = vld [vmem:[%s900 + $0xa0] sm:$0xf]
        %v929 = vld [vmem:[%s900 + $0xa8] sm:$0xf]
        %v930 = vld [vmem:[%s900 + $0xac] sm:$0xf]
        %v931 = vld [vmem:[%s900 + $0xb4] sm:$0xf]
        %v932 = vld [vmem:[%s900 + $0xb8] sm:$0xf]
        %v933 = vunpack.c.l.bf16 %v901
        %v934 = vunpack.c.l.bf16 %v902
        %v935 = vunpack.c.l.bf16 %v903
        %v936 = vunpack.c.l.bf16 %v904
        %v937 = vunpack.c.l.bf16 %v905
        %v938 = vunpack.c.l.bf16 %v906
        %v939 = vunpack.c.l.bf16 %v907
        %v940 = vunpack.c.l.bf16 %v908
        %v941 = vunpack.c.l.bf16 %v909
        %v942 = vunpack.c.l.bf16 %v910
        %v943 = vunpack.c.l.bf16 %v911
        %v944 = vunpack.c.l.bf16 %v912
        %v945 = vunpack.c.l.bf16 %v913
        %v946 = vunpack.c.l.bf16 %v914
        %v947 = vunpack.c.l.bf16 %v915
        %v948 = vunpack.c.l.bf16 %v916
        %v949 = vunpack.c.l.bf16 %v917
        %v950 = vunpack.c.l.bf16 %v918
        %v951 = vunpack.c.l.bf16 %v919
        %v952 = vunpack.c.l.bf16 %v920
        %v953 = vunpack.c.l.bf16 %v921
        %v954 = vunpack.c.l.bf16 %v922
        %v955 = vunpack.c.l.bf16 %v923
        %v956 = vunpack.c.l.bf16 %v924
        %v957 = vunpack.c.l.bf16 %v925
        %v958 = vunpack.c.l.bf16 %v926
        %v959 = vunpack.c.l.bf16 %v927
        %v960 = vunpack.c.l.bf16 %v928
        %v961 = vunpack.c.l.bf16 %v929
        %v962 = vunpack.c.l.bf16 %v930
        %v963 = vunpack.c.l.bf16 %v931
        %v964 = vunpack.c.l.bf16 %v932
        %v965 = vperm.slane %v253, 3
        %v966 = vmul.f32 %v933, %v965
        %v967 = vmul.f32 %v934, %v965
        %v968 = vmul.f32 %v935, %v965
        %v969 = vmul.f32 %v936, %v965
        %v970 = vmul.f32 %v937, %v965
        %v971 = vmul.f32 %v938, %v965
        %v972 = vmul.f32 %v939, %v965
        %v973 = vmul.f32 %v940, %v965
        %v974 = vmul.f32 %v941, %v965
        %v975 = vmul.f32 %v942, %v965
        %v976 = vmul.f32 %v943, %v965
        %v977 = vmul.f32 %v944, %v965
        %v978 = vmul.f32 %v945, %v965
        %v979 = vmul.f32 %v946, %v965
        %v980 = vmul.f32 %v947, %v965
        %v981 = vmul.f32 %v948, %v965
        %v982 = vmul.f32 %v949, %v965
        %v983 = vmul.f32 %v950, %v965
        %v984 = vmul.f32 %v951, %v965
        %v985 = vmul.f32 %v952, %v965
        %v986 = vmul.f32 %v953, %v965
        %v987 = vmul.f32 %v954, %v965
        %v988 = vmul.f32 %v955, %v965
        %v989 = vmul.f32 %v956, %v965
        %v990 = vmul.f32 %v957, %v965
        %v991 = vmul.f32 %v958, %v965
        %v992 = vmul.f32 %v959, %v965
        %v993 = vmul.f32 %v960, %v965
        %v994 = vmul.f32 %v961, %v965
        %v995 = vmul.f32 %v962, %v965
        %v996 = vmul.f32 %v963, %v965
        %v997 = vmul.f32 %v964, %v965
        %v998 = vadd.f32 %v868, %v966
        %v999 = vadd.f32 %v869, %v967
        %v1000 = vadd.f32 %v870, %v968
        %v1001 = vadd.f32 %v871, %v969
        %v1002 = vadd.f32 %v872, %v970
        %v1003 = vadd.f32 %v873, %v971
        %v1004 = vadd.f32 %v874, %v972
        %v1005 = vadd.f32 %v875, %v973
        %v1006 = vadd.f32 %v876, %v974
        %v1007 = vadd.f32 %v877, %v975
        %v1008 = vadd.f32 %v878, %v976
        %v1009 = vadd.f32 %v879, %v977
        %v1010 = vadd.f32 %v880, %v978
        %v1011 = vadd.f32 %v881, %v979
        %v1012 = vadd.f32 %v882, %v980
        %v1013 = vadd.f32 %v883, %v981
        %v1014 = vadd.f32 %v884, %v982
        %v1015 = vadd.f32 %v885, %v983
        %v1016 = vadd.f32 %v886, %v984
        %v1017 = vadd.f32 %v887, %v985
        %v1018 = vadd.f32 %v888, %v986
        %v1019 = vadd.f32 %v889, %v987
        %v1020 = vadd.f32 %v890, %v988
        %v1021 = vadd.f32 %v891, %v989
        %v1022 = vadd.f32 %v892, %v990
        %v1023 = vadd.f32 %v893, %v991
        %v1024 = vadd.f32 %v894, %v992
        %v1025 = vadd.f32 %v895, %v993
        %v1026 = vadd.f32 %v896, %v994
        %v1027 = vadd.f32 %v897, %v995
        %v1028 = vadd.f32 %v898, %v996
        %v1029 = vadd.f32 %v899, %v997
        %v1030 = vld [vmem:[%s900 + $0x8] sm:$0x1]
        %v1031 = vld [vmem:[%s900 + $0x14] sm:$0x1]
        %v1032 = vld [vmem:[%s900 + $0x20] sm:$0x1]
        %v1033 = vld [vmem:[%s900 + $0x2c] sm:$0x1]
        %v1034 = vld [vmem:[%s900 + $0x38] sm:$0x1]
        %v1035 = vld [vmem:[%s900 + $0x44] sm:$0x1]
        %v1036 = vld [vmem:[%s900 + $0x50] sm:$0x1]
        %v1037 = vld [vmem:[%s900 + $0x5c] sm:$0x1]
        %v1038 = vld [vmem:[%s900 + $0x68] sm:$0x1]
        %v1039 = vld [vmem:[%s900 + $0x74] sm:$0x1]
        %v1040 = vld [vmem:[%s900 + $0x80] sm:$0x1]
        %v1041 = vld [vmem:[%s900 + $0x8c] sm:$0x1]
        %v1042 = vld [vmem:[%s900 + $0x98] sm:$0x1]
        %v1043 = vld [vmem:[%s900 + $0xa4] sm:$0x1]
        %v1044 = vld [vmem:[%s900 + $0xb0] sm:$0x1]
        %v1045 = vld [vmem:[%s900 + $0xbc] sm:$0x1]
        %v1046 = vunpack.c.l.bf16 %v1030
        %v1047 = vunpack.c.l.bf16 %v1031
        %v1048 = vunpack.c.l.bf16 %v1032
        %v1049 = vunpack.c.l.bf16 %v1033
        %v1050 = vunpack.c.l.bf16 %v1034
        %v1051 = vunpack.c.l.bf16 %v1035
        %v1052 = vunpack.c.l.bf16 %v1036
        %v1053 = vunpack.c.l.bf16 %v1037
        %v1054 = vunpack.c.l.bf16 %v1038
        %v1055 = vunpack.c.l.bf16 %v1039
        %v1056 = vunpack.c.l.bf16 %v1040
        %v1057 = vunpack.c.l.bf16 %v1041
        %v1058 = vunpack.c.l.bf16 %v1042
        %v1059 = vunpack.c.l.bf16 %v1043
        %v1060 = vunpack.c.l.bf16 %v1044
        %v1061 = vunpack.c.l.bf16 %v1045
        %v1062 = vperm.slane %v253, 4
        %v1063 = vmul.f32 %v933, %v1062
        %v1064 = vmul.f32 %v934, %v1062
        %v1065 = vmul.f32 %v1046, %v1062
        %v1066 = vmul.f32 %v935, %v1062
        %v1067 = vmul.f32 %v936, %v1062
        %v1068 = vmul.f32 %v1047, %v1062
        %v1069 = vmul.f32 %v937, %v1062
        %v1070 = vmul.f32 %v938, %v1062
        %v1071 = vmul.f32 %v1048, %v1062
        %v1072 = vmul.f32 %v939, %v1062
        %v1073 = vmul.f32 %v940, %v1062
        %v1074 = vmul.f32 %v1049, %v1062
        %v1075 = vmul.f32 %v941, %v1062
        %v1076 = vmul.f32 %v942, %v1062
        %v1077 = vmul.f32 %v1050, %v1062
        %v1078 = vmul.f32 %v943, %v1062
        %v1079 = vmul.f32 %v944, %v1062
        %v1080 = vmul.f32 %v1051, %v1062
        %v1081 = vmul.f32 %v945, %v1062
        %v1082 = vmul.f32 %v946, %v1062
        %v1083 = vmul.f32 %v1052, %v1062
        %v1084 = vmul.f32 %v947, %v1062
        %v1085 = vmul.f32 %v948, %v1062
        %v1086 = vmul.f32 %v1053, %v1062
        %v1087 = vmul.f32 %v949, %v1062
        %v1088 = vmul.f32 %v950, %v1062
        %v1089 = vmul.f32 %v1054, %v1062
        %v1090 = vmul.f32 %v951, %v1062
        %v1091 = vmul.f32 %v952, %v1062
        %v1092 = vmul.f32 %v1055, %v1062
        %v1093 = vmul.f32 %v953, %v1062
        %v1094 = vmul.f32 %v954, %v1062
        %v1095 = vmul.f32 %v1056, %v1062
        %v1096 = vmul.f32 %v955, %v1062
        %v1097 = vmul.f32 %v956, %v1062
        %v1098 = vmul.f32 %v1057, %v1062
        %v1099 = vmul.f32 %v957, %v1062
        %v1100 = vmul.f32 %v958, %v1062
        %v1101 = vmul.f32 %v1058, %v1062
        %v1102 = vmul.f32 %v959, %v1062
        %v1103 = vmul.f32 %v960, %v1062
        %v1104 = vmul.f32 %v1059, %v1062
        %v1105 = vmul.f32 %v961, %v1062
        %v1106 = vmul.f32 %v962, %v1062
        %v1107 = vmul.f32 %v1060, %v1062
        %v1108 = vmul.f32 %v963, %v1062
        %v1109 = vmul.f32 %v964, %v1062
        %v1110 = vmul.f32 %v1061, %v1062
        %v1159 = vrot.slane %v1063, 1
        %v1160 = vrot.slane %v1064, 1
        %v1161 = vsel %vm481, %v1159, %v1160
        %v1162 = vrot.slane %v1065, 1
        %v1163 = vsel %vm481, %v1160, %v1162
        %v1164 = vrot.slane %v1066, 1
        %v1165 = vrot.slane %v1067, 1
        %v1166 = vsel %vm481, %v1164, %v1165
        %v1167 = vrot.slane %v1068, 1
        %v1168 = vsel %vm481, %v1165, %v1167
        %v1169 = vrot.slane %v1069, 1
        %v1170 = vrot.slane %v1070, 1
        %v1171 = vsel %vm481, %v1169, %v1170
        %v1172 = vrot.slane %v1071, 1
        %v1173 = vsel %vm481, %v1170, %v1172
        %v1174 = vrot.slane %v1072, 1
        %v1175 = vrot.slane %v1073, 1
        %v1176 = vsel %vm481, %v1174, %v1175
        %v1177 = vrot.slane %v1074, 1
        %v1178 = vsel %vm481, %v1175, %v1177
        %v1179 = vrot.slane %v1075, 1
        %v1180 = vrot.slane %v1076, 1
        %v1181 = vsel %vm481, %v1179, %v1180
        %v1182 = vrot.slane %v1077, 1
        %v1183 = vsel %vm481, %v1180, %v1182
        %v1184 = vrot.slane %v1078, 1
        %v1185 = vrot.slane %v1079, 1
        %v1186 = vsel %vm481, %v1184, %v1185
        %v1187 = vrot.slane %v1080, 1
        %v1188 = vsel %vm481, %v1185, %v1187
        %v1189 = vrot.slane %v1081, 1
        %v1190 = vrot.slane %v1082, 1
        %v1191 = vsel %vm481, %v1189, %v1190
        %v1192 = vrot.slane %v1083, 1
        %v1193 = vsel %vm481, %v1190, %v1192
        %v1194 = vrot.slane %v1084, 1
        %v1195 = vrot.slane %v1085, 1
        %v1196 = vsel %vm481, %v1194, %v1195
        %v1197 = vrot.slane %v1086, 1
        %v1198 = vsel %vm481, %v1195, %v1197
        %v1199 = vrot.slane %v1087, 1
        %v1200 = vrot.slane %v1088, 1
        %v1201 = vsel %vm481, %v1199, %v1200
        %v1202 = vrot.slane %v1089, 1
        %v1203 = vsel %vm481, %v1200, %v1202
        %v1204 = vrot.slane %v1090, 1
        %v1205 = vrot.slane %v1091, 1
        %v1206 = vsel %vm481, %v1204, %v1205
        %v1207 = vrot.slane %v1092, 1
        %v1208 = vsel %vm481, %v1205, %v1207
        %v1209 = vrot.slane %v1093, 1
        %v1210 = vrot.slane %v1094, 1
        %v1211 = vsel %vm481, %v1209, %v1210
        %v1212 = vrot.slane %v1095, 1
        %v1213 = vsel %vm481, %v1210, %v1212
        %v1214 = vrot.slane %v1096, 1
        %v1215 = vrot.slane %v1097, 1
        %v1216 = vsel %vm481, %v1214, %v1215
        %v1217 = vrot.slane %v1098, 1
        %v1218 = vsel %vm481, %v1215, %v1217
        %v1219 = vrot.slane %v1099, 1
        %v1220 = vrot.slane %v1100, 1
        %v1221 = vsel %vm481, %v1219, %v1220
        %v1222 = vrot.slane %v1101, 1
        %v1223 = vsel %vm481, %v1220, %v1222
        %v1224 = vrot.slane %v1102, 1
        %v1225 = vrot.slane %v1103, 1
        %v1226 = vsel %vm481, %v1224, %v1225
        %v1227 = vrot.slane %v1104, 1
        %v1228 = vsel %vm481, %v1225, %v1227
        %v1229 = vrot.slane %v1105, 1
        %v1230 = vrot.slane %v1106, 1
        %v1231 = vsel %vm481, %v1229, %v1230
        %v1232 = vrot.slane %v1107, 1
        %v1233 = vsel %vm481, %v1230, %v1232
        %v1234 = vrot.slane %v1108, 1
        %v1235 = vrot.slane %v1109, 1
        %v1236 = vsel %vm481, %v1234, %v1235
        %v1237 = vrot.slane %v1110, 1
        %v1238 = vsel %vm481, %v1235, %v1237
        %v1271 = vadd.f32 %v998, %v1161
        %v1272 = vadd.f32 %v999, %v1163
        %v1273 = vadd.f32 %v1000, %v1166
        %v1274 = vadd.f32 %v1001, %v1168
        %v1275 = vadd.f32 %v1002, %v1171
        %v1276 = vadd.f32 %v1003, %v1173
        %v1277 = vadd.f32 %v1004, %v1176
        %v1278 = vadd.f32 %v1005, %v1178
        %v1279 = vadd.f32 %v1006, %v1181
        %v1280 = vadd.f32 %v1007, %v1183
        %v1281 = vadd.f32 %v1008, %v1186
        %v1282 = vadd.f32 %v1009, %v1188
        %v1283 = vadd.f32 %v1010, %v1191
        %v1284 = vadd.f32 %v1011, %v1193
        %v1285 = vadd.f32 %v1012, %v1196
        %v1286 = vadd.f32 %v1013, %v1198
        %v1287 = vadd.f32 %v1014, %v1201
        %v1288 = vadd.f32 %v1015, %v1203
        %v1289 = vadd.f32 %v1016, %v1206
        %v1290 = vadd.f32 %v1017, %v1208
        %v1291 = vadd.f32 %v1018, %v1211
        %v1292 = vadd.f32 %v1019, %v1213
        %v1293 = vadd.f32 %v1020, %v1216
        %v1294 = vadd.f32 %v1021, %v1218
        %v1295 = vadd.f32 %v1022, %v1221
        %v1296 = vadd.f32 %v1023, %v1223
        %v1297 = vadd.f32 %v1024, %v1226
        %v1298 = vadd.f32 %v1025, %v1228
        %v1299 = vadd.f32 %v1026, %v1231
        %v1300 = vadd.f32 %v1027, %v1233
        %v1301 = vadd.f32 %v1028, %v1236
        %v1302 = vadd.f32 %v1029, %v1238
        %v1303 = vld [vmem:[%s900] sm:$0xe]
        %v1304 = vld [vmem:[%s900 + $0xc] sm:$0xe]
        %v1305 = vld [vmem:[%s900 + $0x18] sm:$0xe]
        %v1306 = vld [vmem:[%s900 + $0x24] sm:$0xe]
        %v1307 = vld [vmem:[%s900 + $0x30] sm:$0xe]
        %v1308 = vld [vmem:[%s900 + $0x3c] sm:$0xe]
        %v1309 = vld [vmem:[%s900 + $0x48] sm:$0xe]
        %v1310 = vld [vmem:[%s900 + $0x54] sm:$0xe]
        %v1311 = vld [vmem:[%s900 + $0x60] sm:$0xe]
        %v1312 = vld [vmem:[%s900 + $0x6c] sm:$0xe]
        %v1313 = vld [vmem:[%s900 + $0x78] sm:$0xe]
        %v1314 = vld [vmem:[%s900 + $0x84] sm:$0xe]
        %v1315 = vld [vmem:[%s900 + $0x90] sm:$0xe]
        %v1316 = vld [vmem:[%s900 + $0x9c] sm:$0xe]
        %v1317 = vld [vmem:[%s900 + $0xa8] sm:$0xe]
        %v1318 = vld [vmem:[%s900 + $0xb4] sm:$0xe]
        %v1319 = vunpack.c.l.bf16 %v1303
        %v1320 = vunpack.c.l.bf16 %v1304
        %v1321 = vunpack.c.l.bf16 %v1305
        %v1322 = vunpack.c.l.bf16 %v1306
        %v1323 = vunpack.c.l.bf16 %v1307
        %v1324 = vunpack.c.l.bf16 %v1308
        %v1325 = vunpack.c.l.bf16 %v1309
        %v1326 = vunpack.c.l.bf16 %v1310
        %v1327 = vunpack.c.l.bf16 %v1311
        %v1328 = vunpack.c.l.bf16 %v1312
        %v1329 = vunpack.c.l.bf16 %v1313
        %v1330 = vunpack.c.l.bf16 %v1314
        %v1331 = vunpack.c.l.bf16 %v1315
        %v1332 = vunpack.c.l.bf16 %v1316
        %v1333 = vunpack.c.l.bf16 %v1317
        %v1334 = vunpack.c.l.bf16 %v1318
        %v1335 = vperm.slane %v253, 5
        %v1336 = vmul.f32 %v1319, %v1335
        %v1337 = vmul.f32 %v934, %v1335
        %v1338 = vmul.f32 %v1046, %v1335
        %v1339 = vmul.f32 %v1320, %v1335
        %v1340 = vmul.f32 %v936, %v1335
        %v1341 = vmul.f32 %v1047, %v1335
        %v1342 = vmul.f32 %v1321, %v1335
        %v1343 = vmul.f32 %v938, %v1335
        %v1344 = vmul.f32 %v1048, %v1335
        %v1345 = vmul.f32 %v1322, %v1335
        %v1346 = vmul.f32 %v940, %v1335
        %v1347 = vmul.f32 %v1049, %v1335
        %v1348 = vmul.f32 %v1323, %v1335
        %v1349 = vmul.f32 %v942, %v1335
        %v1350 = vmul.f32 %v1050, %v1335
        %v1351 = vmul.f32 %v1324, %v1335
        %v1352 = vmul.f32 %v944, %v1335
        %v1353 = vmul.f32 %v1051, %v1335
        %v1354 = vmul.f32 %v1325, %v1335
        %v1355 = vmul.f32 %v946, %v1335
        %v1356 = vmul.f32 %v1052, %v1335
        %v1357 = vmul.f32 %v1326, %v1335
        %v1358 = vmul.f32 %v948, %v1335
        %v1359 = vmul.f32 %v1053, %v1335
        %v1360 = vmul.f32 %v1327, %v1335
        %v1361 = vmul.f32 %v950, %v1335
        %v1362 = vmul.f32 %v1054, %v1335
        %v1363 = vmul.f32 %v1328, %v1335
        %v1364 = vmul.f32 %v952, %v1335
        %v1365 = vmul.f32 %v1055, %v1335
        %v1366 = vmul.f32 %v1329, %v1335
        %v1367 = vmul.f32 %v954, %v1335
        %v1368 = vmul.f32 %v1056, %v1335
        %v1369 = vmul.f32 %v1330, %v1335
        %v1370 = vmul.f32 %v956, %v1335
        %v1371 = vmul.f32 %v1057, %v1335
        %v1372 = vmul.f32 %v1331, %v1335
        %v1373 = vmul.f32 %v958, %v1335
        %v1374 = vmul.f32 %v1058, %v1335
        %v1375 = vmul.f32 %v1332, %v1335
        %v1376 = vmul.f32 %v960, %v1335
        %v1377 = vmul.f32 %v1059, %v1335
        %v1378 = vmul.f32 %v1333, %v1335
        %v1379 = vmul.f32 %v962, %v1335
        %v1380 = vmul.f32 %v1060, %v1335
        %v1381 = vmul.f32 %v1334, %v1335
        %v1382 = vmul.f32 %v964, %v1335
        %v1383 = vmul.f32 %v1061, %v1335
        %v1432 = vrot.slane %v1336, 2
        %v1433 = vrot.slane %v1337, 2
        %v1434 = vsel %vm755, %v1432, %v1433
        %v1435 = vrot.slane %v1338, 2
        %v1436 = vsel %vm755, %v1433, %v1435
        %v1437 = vrot.slane %v1339, 2
        %v1438 = vrot.slane %v1340, 2
        %v1439 = vsel %vm755, %v1437, %v1438
        %v1440 = vrot.slane %v1341, 2
        %v1441 = vsel %vm755, %v1438, %v1440
        %v1442 = vrot.slane %v1342, 2
        %v1443 = vrot.slane %v1343, 2
        %v1444 = vsel %vm755, %v1442, %v1443
        %v1445 = vrot.slane %v1344, 2
        %v1446 = vsel %vm755, %v1443, %v1445
        %v1447 = vrot.slane %v1345, 2
        %v1448 = vrot.slane %v1346, 2
        %v1449 = vsel %vm755, %v1447, %v1448
        %v1450 = vrot.slane %v1347, 2
        %v1451 = vsel %vm755, %v1448, %v1450
        %v1452 = vrot.slane %v1348, 2
        %v1453 = vrot.slane %v1349, 2
        %v1454 = vsel %vm755, %v1452, %v1453
        %v1455 = vrot.slane %v1350, 2
        %v1456 = vsel %vm755, %v1453, %v1455
        %v1457 = vrot.slane %v1351, 2
        %v1458 = vrot.slane %v1352, 2
        %v1459 = vsel %vm755, %v1457, %v1458
        %v1460 = vrot.slane %v1353, 2
        %v1461 = vsel %vm755, %v1458, %v1460
        %v1462 = vrot.slane %v1354, 2
        %v1463 = vrot.slane %v1355, 2
        %v1464 = vsel %vm755, %v1462, %v1463
        %v1465 = vrot.slane %v1356, 2
        %v1466 = vsel %vm755, %v1463, %v1465
        %v1467 = vrot.slane %v1357, 2
        %v1468 = vrot.slane %v1358, 2
        %v1469 = vsel %vm755, %v1467, %v1468
        %v1470 = vrot.slane %v1359, 2
        %v1471 = vsel %vm755, %v1468, %v1470
        %v1472 = vrot.slane %v1360, 2
        %v1473 = vrot.slane %v1361, 2
        %v1474 = vsel %vm755, %v1472, %v1473
        %v1475 = vrot.slane %v1362, 2
        %v1476 = vsel %vm755, %v1473, %v1475
        %v1477 = vrot.slane %v1363, 2
        %v1478 = vrot.slane %v1364, 2
        %v1479 = vsel %vm755, %v1477, %v1478
        %v1480 = vrot.slane %v1365, 2
        %v1481 = vsel %vm755, %v1478, %v1480
        %v1482 = vrot.slane %v1366, 2
        %v1483 = vrot.slane %v1367, 2
        %v1484 = vsel %vm755, %v1482, %v1483
        %v1485 = vrot.slane %v1368, 2
        %v1486 = vsel %vm755, %v1483, %v1485
        %v1487 = vrot.slane %v1369, 2
        %v1488 = vrot.slane %v1370, 2
        %v1489 = vsel %vm755, %v1487, %v1488
        %v1490 = vrot.slane %v1371, 2
        %v1491 = vsel %vm755, %v1488, %v1490
        %v1492 = vrot.slane %v1372, 2
        %v1493 = vrot.slane %v1373, 2
        %v1494 = vsel %vm755, %v1492, %v1493
        %v1495 = vrot.slane %v1374, 2
        %v1496 = vsel %vm755, %v1493, %v1495
        %v1497 = vrot.slane %v1375, 2
        %v1498 = vrot.slane %v1376, 2
        %v1499 = vsel %vm755, %v1497, %v1498
        %v1500 = vrot.slane %v1377, 2
        %v1501 = vsel %vm755, %v1498, %v1500
        %v1502 = vrot.slane %v1378, 2
        %v1503 = vrot.slane %v1379, 2
        %v1504 = vsel %vm755, %v1502, %v1503
        %v1505 = vrot.slane %v1380, 2
        %v1506 = vsel %vm755, %v1503, %v1505
        %v1507 = vrot.slane %v1381, 2
        %v1508 = vrot.slane %v1382, 2
        %v1509 = vsel %vm755, %v1507, %v1508
        %v1510 = vrot.slane %v1383, 2
        %v1511 = vsel %vm755, %v1508, %v1510
        %v1544 = vadd.f32 %v1271, %v1434
        %v1545 = vadd.f32 %v1272, %v1436
        %v1546 = vadd.f32 %v1273, %v1439
        %v1547 = vadd.f32 %v1274, %v1441
        %v1548 = vadd.f32 %v1275, %v1444
        %v1549 = vadd.f32 %v1276, %v1446
        %v1550 = vadd.f32 %v1277, %v1449
        %v1551 = vadd.f32 %v1278, %v1451
        %v1552 = vadd.f32 %v1279, %v1454
        %v1553 = vadd.f32 %v1280, %v1456
        %v1554 = vadd.f32 %v1281, %v1459
        %v1555 = vadd.f32 %v1282, %v1461
        %v1556 = vadd.f32 %v1283, %v1464
        %v1557 = vadd.f32 %v1284, %v1466
        %v1558 = vadd.f32 %v1285, %v1469
        %v1559 = vadd.f32 %v1286, %v1471
        %v1560 = vadd.f32 %v1287, %v1474
        %v1561 = vadd.f32 %v1288, %v1476
        %v1562 = vadd.f32 %v1289, %v1479
        %v1563 = vadd.f32 %v1290, %v1481
        %v1564 = vadd.f32 %v1291, %v1484
        %v1565 = vadd.f32 %v1292, %v1486
        %v1566 = vadd.f32 %v1293, %v1489
        %v1567 = vadd.f32 %v1294, %v1491
        %v1568 = vadd.f32 %v1295, %v1494
        %v1569 = vadd.f32 %v1296, %v1496
        %v1570 = vadd.f32 %v1297, %v1499
        %v1571 = vadd.f32 %v1298, %v1501
        %v1572 = vadd.f32 %v1299, %v1504
        %v1573 = vadd.f32 %v1300, %v1506
        %v1574 = vadd.f32 %v1301, %v1509
        %v1575 = vadd.f32 %v1302, %v1511
        %s1576 = scalar_lea.vmem %s233, 24
        %v1577 = vld [vmem:[%s1576] sm:$0xf]
        %v1578 = vld [vmem:[%s1576 + $0x4] sm:$0xf]
        %v1579 = vld [vmem:[%s1576 + $0xc] sm:$0xf]
        %v1580 = vld [vmem:[%s1576 + $0x10] sm:$0xf]
        %v1581 = vld [vmem:[%s1576 + $0x18] sm:$0xf]
        %v1582 = vld [vmem:[%s1576 + $0x1c] sm:$0xf]
        %v1583 = vld [vmem:[%s1576 + $0x24] sm:$0xf]
        %v1584 = vld [vmem:[%s1576 + $0x28] sm:$0xf]
        %v1585 = vld [vmem:[%s1576 + $0x30] sm:$0xf]
        %v1586 = vld [vmem:[%s1576 + $0x34] sm:$0xf]
        %v1587 = vld [vmem:[%s1576 + $0x3c] sm:$0xf]
        %v1588 = vld [vmem:[%s1576 + $0x40] sm:$0xf]
        %v1589 = vld [vmem:[%s1576 + $0x48] sm:$0xf]
        %v1590 = vld [vmem:[%s1576 + $0x4c] sm:$0xf]
        %v1591 = vld [vmem:[%s1576 + $0x54] sm:$0xf]
        %v1592 = vld [vmem:[%s1576 + $0x58] sm:$0xf]
        %v1593 = vld [vmem:[%s1576 + $0x60] sm:$0xf]
        %v1594 = vld [vmem:[%s1576 + $0x64] sm:$0xf]
        %v1595 = vld [vmem:[%s1576 + $0x6c] sm:$0xf]
        %v1596 = vld [vmem:[%s1576 + $0x70] sm:$0xf]
        %v1597 = vld [vmem:[%s1576 + $0x78] sm:$0xf]
        %v1598 = vld [vmem:[%s1576 + $0x7c] sm:$0xf]
        %v1599 = vld [vmem:[%s1576 + $0x84] sm:$0xf]
        %v1600 = vld [vmem:[%s1576 + $0x88] sm:$0xf]
        %v1601 = vld [vmem:[%s1576 + $0x90] sm:$0xf]
        %v1602 = vld [vmem:[%s1576 + $0x94] sm:$0xf]
        %v1603 = vld [vmem:[%s1576 + $0x9c] sm:$0xf]
        %v1604 = vld [vmem:[%s1576 + $0xa0] sm:$0xf]
        %v1605 = vld [vmem:[%s1576 + $0xa8] sm:$0xf]
        %v1606 = vld [vmem:[%s1576 + $0xac] sm:$0xf]
        %v1607 = vld [vmem:[%s1576 + $0xb4] sm:$0xf]
        %v1608 = vld [vmem:[%s1576 + $0xb8] sm:$0xf]
        %v1609 = vunpack.c.l.bf16 %v1577
        %v1610 = vunpack.c.l.bf16 %v1578
        %v1611 = vunpack.c.l.bf16 %v1579
        %v1612 = vunpack.c.l.bf16 %v1580
        %v1613 = vunpack.c.l.bf16 %v1581
        %v1614 = vunpack.c.l.bf16 %v1582
        %v1615 = vunpack.c.l.bf16 %v1583
        %v1616 = vunpack.c.l.bf16 %v1584
        %v1617 = vunpack.c.l.bf16 %v1585
        %v1618 = vunpack.c.l.bf16 %v1586
        %v1619 = vunpack.c.l.bf16 %v1587
        %v1620 = vunpack.c.l.bf16 %v1588
        %v1621 = vunpack.c.l.bf16 %v1589
        %v1622 = vunpack.c.l.bf16 %v1590
        %v1623 = vunpack.c.l.bf16 %v1591
        %v1624 = vunpack.c.l.bf16 %v1592
        %v1625 = vunpack.c.l.bf16 %v1593
        %v1626 = vunpack.c.l.bf16 %v1594
        %v1627 = vunpack.c.l.bf16 %v1595
        %v1628 = vunpack.c.l.bf16 %v1596
        %v1629 = vunpack.c.l.bf16 %v1597
        %v1630 = vunpack.c.l.bf16 %v1598
        %v1631 = vunpack.c.l.bf16 %v1599
        %v1632 = vunpack.c.l.bf16 %v1600
        %v1633 = vunpack.c.l.bf16 %v1601
        %v1634 = vunpack.c.l.bf16 %v1602
        %v1635 = vunpack.c.l.bf16 %v1603
        %v1636 = vunpack.c.l.bf16 %v1604
        %v1637 = vunpack.c.l.bf16 %v1605
        %v1638 = vunpack.c.l.bf16 %v1606
        %v1639 = vunpack.c.l.bf16 %v1607
        %v1640 = vunpack.c.l.bf16 %v1608
        %v1641 = vperm.slane %v253, 6
        %v1642 = vmul.f32 %v1609, %v1641
        %v1643 = vmul.f32 %v1610, %v1641
        %v1644 = vmul.f32 %v1611, %v1641
        %v1645 = vmul.f32 %v1612, %v1641
        %v1646 = vmul.f32 %v1613, %v1641
        %v1647 = vmul.f32 %v1614, %v1641
        %v1648 = vmul.f32 %v1615, %v1641
        %v1649 = vmul.f32 %v1616, %v1641
        %v1650 = vmul.f32 %v1617, %v1641
        %v1651 = vmul.f32 %v1618, %v1641
        %v1652 = vmul.f32 %v1619, %v1641
        %v1653 = vmul.f32 %v1620, %v1641
        %v1654 = vmul.f32 %v1621, %v1641
        %v1655 = vmul.f32 %v1622, %v1641
        %v1656 = vmul.f32 %v1623, %v1641
        %v1657 = vmul.f32 %v1624, %v1641
        %v1658 = vmul.f32 %v1625, %v1641
        %v1659 = vmul.f32 %v1626, %v1641
        %v1660 = vmul.f32 %v1627, %v1641
        %v1661 = vmul.f32 %v1628, %v1641
        %v1662 = vmul.f32 %v1629, %v1641
        %v1663 = vmul.f32 %v1630, %v1641
        %v1664 = vmul.f32 %v1631, %v1641
        %v1665 = vmul.f32 %v1632, %v1641
        %v1666 = vmul.f32 %v1633, %v1641
        %v1667 = vmul.f32 %v1634, %v1641
        %v1668 = vmul.f32 %v1635, %v1641
        %v1669 = vmul.f32 %v1636, %v1641
        %v1670 = vmul.f32 %v1637, %v1641
        %v1671 = vmul.f32 %v1638, %v1641
        %v1672 = vmul.f32 %v1639, %v1641
        %v1673 = vmul.f32 %v1640, %v1641
        %v1674 = vadd.f32 %v1544, %v1642
        %v1675 = vadd.f32 %v1545, %v1643
        %v1676 = vadd.f32 %v1546, %v1644
        %v1677 = vadd.f32 %v1547, %v1645
        %v1678 = vadd.f32 %v1548, %v1646
        %v1679 = vadd.f32 %v1549, %v1647
        %v1680 = vadd.f32 %v1550, %v1648
        %v1681 = vadd.f32 %v1551, %v1649
        %v1682 = vadd.f32 %v1552, %v1650
        %v1683 = vadd.f32 %v1553, %v1651
        %v1684 = vadd.f32 %v1554, %v1652
        %v1685 = vadd.f32 %v1555, %v1653
        %v1686 = vadd.f32 %v1556, %v1654
        %v1687 = vadd.f32 %v1557, %v1655
        %v1688 = vadd.f32 %v1558, %v1656
        %v1689 = vadd.f32 %v1559, %v1657
        %v1690 = vadd.f32 %v1560, %v1658
        %v1691 = vadd.f32 %v1561, %v1659
        %v1692 = vadd.f32 %v1562, %v1660
        %v1693 = vadd.f32 %v1563, %v1661
        %v1694 = vadd.f32 %v1564, %v1662
        %v1695 = vadd.f32 %v1565, %v1663
        %v1696 = vadd.f32 %v1566, %v1664
        %v1697 = vadd.f32 %v1567, %v1665
        %v1698 = vadd.f32 %v1568, %v1666
        %v1699 = vadd.f32 %v1569, %v1667
        %v1700 = vadd.f32 %v1570, %v1668
        %v1701 = vadd.f32 %v1571, %v1669
        %v1702 = vadd.f32 %v1572, %v1670
        %v1703 = vadd.f32 %v1573, %v1671
        %v1704 = vadd.f32 %v1574, %v1672
        %v1705 = vadd.f32 %v1575, %v1673
        %v1706 = vld [vmem:[%s1576 + $0x8] sm:$0x1]
        %v1707 = vld [vmem:[%s1576 + $0x14] sm:$0x1]
        %v1708 = vld [vmem:[%s1576 + $0x20] sm:$0x1]
        %v1709 = vld [vmem:[%s1576 + $0x2c] sm:$0x1]
        %v1710 = vld [vmem:[%s1576 + $0x38] sm:$0x1]
        %v1711 = vld [vmem:[%s1576 + $0x44] sm:$0x1]
        %v1712 = vld [vmem:[%s1576 + $0x50] sm:$0x1]
        %v1713 = vld [vmem:[%s1576 + $0x5c] sm:$0x1]
        %v1714 = vld [vmem:[%s1576 + $0x68] sm:$0x1]
        %v1715 = vld [vmem:[%s1576 + $0x74] sm:$0x1]
        %v1716 = vld [vmem:[%s1576 + $0x80] sm:$0x1]
        %v1717 = vld [vmem:[%s1576 + $0x8c] sm:$0x1]
        %v1718 = vld [vmem:[%s1576 + $0x98] sm:$0x1]
        %v1719 = vld [vmem:[%s1576 + $0xa4] sm:$0x1]
        %v1720 = vld [vmem:[%s1576 + $0xb0] sm:$0x1]
        %v1721 = vld [vmem:[%s1576 + $0xbc] sm:$0x1]
        %v1722 = vunpack.c.l.bf16 %v1706
        %v1723 = vunpack.c.l.bf16 %v1707
        %v1724 = vunpack.c.l.bf16 %v1708
        %v1725 = vunpack.c.l.bf16 %v1709
        %v1726 = vunpack.c.l.bf16 %v1710
        %v1727 = vunpack.c.l.bf16 %v1711
        %v1728 = vunpack.c.l.bf16 %v1712
        %v1729 = vunpack.c.l.bf16 %v1713
        %v1730 = vunpack.c.l.bf16 %v1714
        %v1731 = vunpack.c.l.bf16 %v1715
        %v1732 = vunpack.c.l.bf16 %v1716
        %v1733 = vunpack.c.l.bf16 %v1717
        %v1734 = vunpack.c.l.bf16 %v1718
        %v1735 = vunpack.c.l.bf16 %v1719
        %v1736 = vunpack.c.l.bf16 %v1720
        %v1737 = vunpack.c.l.bf16 %v1721
        %v1738 = vperm.slane %v253, 7
        %v1739 = vmul.f32 %v1609, %v1738
        %v1740 = vmul.f32 %v1610, %v1738
        %v1741 = vmul.f32 %v1722, %v1738
        %v1742 = vmul.f32 %v1611, %v1738
        %v1743 = vmul.f32 %v1612, %v1738
        %v1744 = vmul.f32 %v1723, %v1738
        %v1745 = vmul.f32 %v1613, %v1738
        %v1746 = vmul.f32 %v1614, %v1738
        %v1747 = vmul.f32 %v1724, %v1738
        %v1748 = vmul.f32 %v1615, %v1738
        %v1749 = vmul.f32 %v1616, %v1738
        %v1750 = vmul.f32 %v1725, %v1738
        %v1751 = vmul.f32 %v1617, %v1738
        %v1752 = vmul.f32 %v1618, %v1738
        %v1753 = vmul.f32 %v1726, %v1738
        %v1754 = vmul.f32 %v1619, %v1738
        %v1755 = vmul.f32 %v1620, %v1738
        %v1756 = vmul.f32 %v1727, %v1738
        %v1757 = vmul.f32 %v1621, %v1738
        %v1758 = vmul.f32 %v1622, %v1738
        %v1759 = vmul.f32 %v1728, %v1738
        %v1760 = vmul.f32 %v1623, %v1738
        %v1761 = vmul.f32 %v1624, %v1738
        %v1762 = vmul.f32 %v1729, %v1738
        %v1763 = vmul.f32 %v1625, %v1738
        %v1764 = vmul.f32 %v1626, %v1738
        %v1765 = vmul.f32 %v1730, %v1738
        %v1766 = vmul.f32 %v1627, %v1738
        %v1767 = vmul.f32 %v1628, %v1738
        %v1768 = vmul.f32 %v1731, %v1738
        %v1769 = vmul.f32 %v1629, %v1738
        %v1770 = vmul.f32 %v1630, %v1738
        %v1771 = vmul.f32 %v1732, %v1738
        %v1772 = vmul.f32 %v1631, %v1738
        %v1773 = vmul.f32 %v1632, %v1738
        %v1774 = vmul.f32 %v1733, %v1738
        %v1775 = vmul.f32 %v1633, %v1738
        %v1776 = vmul.f32 %v1634, %v1738
        %v1777 = vmul.f32 %v1734, %v1738
        %v1778 = vmul.f32 %v1635, %v1738
        %v1779 = vmul.f32 %v1636, %v1738
        %v1780 = vmul.f32 %v1735, %v1738
        %v1781 = vmul.f32 %v1637, %v1738
        %v1782 = vmul.f32 %v1638, %v1738
        %v1783 = vmul.f32 %v1736, %v1738
        %v1784 = vmul.f32 %v1639, %v1738
        %v1785 = vmul.f32 %v1640, %v1738
        %v1786 = vmul.f32 %v1737, %v1738
        %v1835 = vrot.slane %v1739, 1
        %v1836 = vrot.slane %v1740, 1
        %v1837 = vsel %vm481, %v1835, %v1836
        %v1838 = vrot.slane %v1741, 1
        %v1839 = vsel %vm481, %v1836, %v1838
        %v1840 = vrot.slane %v1742, 1
        %v1841 = vrot.slane %v1743, 1
        %v1842 = vsel %vm481, %v1840, %v1841
        %v1843 = vrot.slane %v1744, 1
        %v1844 = vsel %vm481, %v1841, %v1843
        %v1845 = vrot.slane %v1745, 1
        %v1846 = vrot.slane %v1746, 1
        %v1847 = vsel %vm481, %v1845, %v1846
        %v1848 = vrot.slane %v1747, 1
        %v1849 = vsel %vm481, %v1846, %v1848
        %v1850 = vrot.slane %v1748, 1
        %v1851 = vrot.slane %v1749, 1
        %v1852 = vsel %vm481, %v1850, %v1851
        %v1853 = vrot.slane %v1750, 1
        %v1854 = vsel %vm481, %v1851, %v1853
        %v1855 = vrot.slane %v1751, 1
        %v1856 = vrot.slane %v1752, 1
        %v1857 = vsel %vm481, %v1855, %v1856
        %v1858 = vrot.slane %v1753, 1
        %v1859 = vsel %vm481, %v1856, %v1858
        %v1860 = vrot.slane %v1754, 1
        %v1861 = vrot.slane %v1755, 1
        %v1862 = vsel %vm481, %v1860, %v1861
        %v1863 = vrot.slane %v1756, 1
        %v1864 = vsel %vm481, %v1861, %v1863
        %v1865 = vrot.slane %v1757, 1
        %v1866 = vrot.slane %v1758, 1
        %v1867 = vsel %vm481, %v1865, %v1866
        %v1868 = vrot.slane %v1759, 1
        %v1869 = vsel %vm481, %v1866, %v1868
        %v1870 = vrot.slane %v1760, 1
        %v1871 = vrot.slane %v1761, 1
        %v1872 = vsel %vm481, %v1870, %v1871
        %v1873 = vrot.slane %v1762, 1
        %v1874 = vsel %vm481, %v1871, %v1873
        %v1875 = vrot.slane %v1763, 1
        %v1876 = vrot.slane %v1764, 1
        %v1877 = vsel %vm481, %v1875, %v1876
        %v1878 = vrot.slane %v1765, 1
        %v1879 = vsel %vm481, %v1876, %v1878
        %v1880 = vrot.slane %v1766, 1
        %v1881 = vrot.slane %v1767, 1
        %v1882 = vsel %vm481, %v1880, %v1881
        %v1883 = vrot.slane %v1768, 1
        %v1884 = vsel %vm481, %v1881, %v1883
        %v1885 = vrot.slane %v1769, 1
        %v1886 = vrot.slane %v1770, 1
        %v1887 = vsel %vm481, %v1885, %v1886
        %v1888 = vrot.slane %v1771, 1
        %v1889 = vsel %vm481, %v1886, %v1888
        %v1890 = vrot.slane %v1772, 1
        %v1891 = vrot.slane %v1773, 1
        %v1892 = vsel %vm481, %v1890, %v1891
        %v1893 = vrot.slane %v1774, 1
        %v1894 = vsel %vm481, %v1891, %v1893
        %v1895 = vrot.slane %v1775, 1
        %v1896 = vrot.slane %v1776, 1
        %v1897 = vsel %vm481, %v1895, %v1896
        %v1898 = vrot.slane %v1777, 1
        %v1899 = vsel %vm481, %v1896, %v1898
        %v1900 = vrot.slane %v1778, 1
        %v1901 = vrot.slane %v1779, 1
        %v1902 = vsel %vm481, %v1900, %v1901
        %v1903 = vrot.slane %v1780, 1
        %v1904 = vsel %vm481, %v1901, %v1903
        %v1905 = vrot.slane %v1781, 1
        %v1906 = vrot.slane %v1782, 1
        %v1907 = vsel %vm481, %v1905, %v1906
        %v1908 = vrot.slane %v1783, 1
        %v1909 = vsel %vm481, %v1906, %v1908
        %v1910 = vrot.slane %v1784, 1
        %v1911 = vrot.slane %v1785, 1
        %v1912 = vsel %vm481, %v1910, %v1911
        %v1913 = vrot.slane %v1786, 1
        %v1914 = vsel %vm481, %v1911, %v1913
        %v1947 = vadd.f32 %v1674, %v1837
        %v1948 = vadd.f32 %v1675, %v1839
        %v1949 = vadd.f32 %v1676, %v1842
        %v1950 = vadd.f32 %v1677, %v1844
        %v1951 = vadd.f32 %v1678, %v1847
        %v1952 = vadd.f32 %v1679, %v1849
        %v1953 = vadd.f32 %v1680, %v1852
        %v1954 = vadd.f32 %v1681, %v1854
        %v1955 = vadd.f32 %v1682, %v1857
        %v1956 = vadd.f32 %v1683, %v1859
        %v1957 = vadd.f32 %v1684, %v1862
        %v1958 = vadd.f32 %v1685, %v1864
        %v1959 = vadd.f32 %v1686, %v1867
        %v1960 = vadd.f32 %v1687, %v1869
        %v1961 = vadd.f32 %v1688, %v1872
        %v1962 = vadd.f32 %v1689, %v1874
        %v1963 = vadd.f32 %v1690, %v1877
        %v1964 = vadd.f32 %v1691, %v1879
        %v1965 = vadd.f32 %v1692, %v1882
        %v1966 = vadd.f32 %v1693, %v1884
        %v1967 = vadd.f32 %v1694, %v1887
        %v1968 = vadd.f32 %v1695, %v1889
        %v1969 = vadd.f32 %v1696, %v1892
        %v1970 = vadd.f32 %v1697, %v1894
        %v1971 = vadd.f32 %v1698, %v1897
        %v1972 = vadd.f32 %v1699, %v1899
        %v1973 = vadd.f32 %v1700, %v1902
        %v1974 = vadd.f32 %v1701, %v1904
        %v1975 = vadd.f32 %v1702, %v1907
        %v1976 = vadd.f32 %v1703, %v1909
        %v1977 = vadd.f32 %v1704, %v1912
        %v1978 = vadd.f32 %v1705, %v1914
        %v1979 = vld [vmem:[%s1576] sm:$0xe]
        %v1980 = vld [vmem:[%s1576 + $0xc] sm:$0xe]
        %v1981 = vld [vmem:[%s1576 + $0x18] sm:$0xe]
        %v1982 = vld [vmem:[%s1576 + $0x24] sm:$0xe]
        %v1983 = vld [vmem:[%s1576 + $0x30] sm:$0xe]
        %v1984 = vld [vmem:[%s1576 + $0x3c] sm:$0xe]
        %v1985 = vld [vmem:[%s1576 + $0x48] sm:$0xe]
        %v1986 = vld [vmem:[%s1576 + $0x54] sm:$0xe]
        %v1987 = vld [vmem:[%s1576 + $0x60] sm:$0xe]
        %v1988 = vld [vmem:[%s1576 + $0x6c] sm:$0xe]
        %v1989 = vld [vmem:[%s1576 + $0x78] sm:$0xe]
        %v1990 = vld [vmem:[%s1576 + $0x84] sm:$0xe]
        %v1991 = vld [vmem:[%s1576 + $0x90] sm:$0xe]
        %v1992 = vld [vmem:[%s1576 + $0x9c] sm:$0xe]
        %v1993 = vld [vmem:[%s1576 + $0xa8] sm:$0xe]
        %v1994 = vld [vmem:[%s1576 + $0xb4] sm:$0xe]
        %v1995 = vunpack.c.l.bf16 %v1979
        %v1996 = vunpack.c.l.bf16 %v1980
        %v1997 = vunpack.c.l.bf16 %v1981
        %v1998 = vunpack.c.l.bf16 %v1982
        %v1999 = vunpack.c.l.bf16 %v1983
        %v2000 = vunpack.c.l.bf16 %v1984
        %v2001 = vunpack.c.l.bf16 %v1985
        %v2002 = vunpack.c.l.bf16 %v1986
        %v2003 = vunpack.c.l.bf16 %v1987
        %v2004 = vunpack.c.l.bf16 %v1988
        %v2005 = vunpack.c.l.bf16 %v1989
        %v2006 = vunpack.c.l.bf16 %v1990
        %v2007 = vunpack.c.l.bf16 %v1991
        %v2008 = vunpack.c.l.bf16 %v1992
        %v2009 = vunpack.c.l.bf16 %v1993
        %v2010 = vunpack.c.l.bf16 %v1994
        %v2011 = vperm.slane %v254, 0
        %v2012 = vmul.f32 %v1995, %v2011
        %v2013 = vmul.f32 %v1610, %v2011
        %v2014 = vmul.f32 %v1722, %v2011
        %v2015 = vmul.f32 %v1996, %v2011
        %v2016 = vmul.f32 %v1612, %v2011
        %v2017 = vmul.f32 %v1723, %v2011
        %v2018 = vmul.f32 %v1997, %v2011
        %v2019 = vmul.f32 %v1614, %v2011
        %v2020 = vmul.f32 %v1724, %v2011
        %v2021 = vmul.f32 %v1998, %v2011
        %v2022 = vmul.f32 %v1616, %v2011
        %v2023 = vmul.f32 %v1725, %v2011
        %v2024 = vmul.f32 %v1999, %v2011
        %v2025 = vmul.f32 %v1618, %v2011
        %v2026 = vmul.f32 %v1726, %v2011
        %v2027 = vmul.f32 %v2000, %v2011
        %v2028 = vmul.f32 %v1620, %v2011
        %v2029 = vmul.f32 %v1727, %v2011
        %v2030 = vmul.f32 %v2001, %v2011
        %v2031 = vmul.f32 %v1622, %v2011
        %v2032 = vmul.f32 %v1728, %v2011
        %v2033 = vmul.f32 %v2002, %v2011
        %v2034 = vmul.f32 %v1624, %v2011
        %v2035 = vmul.f32 %v1729, %v2011
        %v2036 = vmul.f32 %v2003, %v2011
        %v2037 = vmul.f32 %v1626, %v2011
        %v2038 = vmul.f32 %v1730, %v2011
        %v2039 = vmul.f32 %v2004, %v2011
        %v2040 = vmul.f32 %v1628, %v2011
        %v2041 = vmul.f32 %v1731, %v2011
        %v2042 = vmul.f32 %v2005, %v2011
        %v2043 = vmul.f32 %v1630, %v2011
        %v2044 = vmul.f32 %v1732, %v2011
        %v2045 = vmul.f32 %v2006, %v2011
        %v2046 = vmul.f32 %v1632, %v2011
        %v2047 = vmul.f32 %v1733, %v2011
        %v2048 = vmul.f32 %v2007, %v2011
        %v2049 = vmul.f32 %v1634, %v2011
        %v2050 = vmul.f32 %v1734, %v2011
        %v2051 = vmul.f32 %v2008, %v2011
        %v2052 = vmul.f32 %v1636, %v2011
        %v2053 = vmul.f32 %v1735, %v2011
        %v2054 = vmul.f32 %v2009, %v2011
        %v2055 = vmul.f32 %v1638, %v2011
        %v2056 = vmul.f32 %v1736, %v2011
        %v2057 = vmul.f32 %v2010, %v2011
        %v2058 = vmul.f32 %v1640, %v2011
        %v2059 = vmul.f32 %v1737, %v2011
        %v2108 = vrot.slane %v2012, 2
        %v2109 = vrot.slane %v2013, 2
        %v2110 = vsel %vm755, %v2108, %v2109
        %v2111 = vrot.slane %v2014, 2
        %v2112 = vsel %vm755, %v2109, %v2111
        %v2113 = vrot.slane %v2015, 2
        %v2114 = vrot.slane %v2016, 2
        %v2115 = vsel %vm755, %v2113, %v2114
        %v2116 = vrot.slane %v2017, 2
        %v2117 = vsel %vm755, %v2114, %v2116
        %v2118 = vrot.slane %v2018, 2
        %v2119 = vrot.slane %v2019, 2
        %v2120 = vsel %vm755, %v2118, %v2119
        %v2121 = vrot.slane %v2020, 2
        %v2122 = vsel %vm755, %v2119, %v2121
        %v2123 = vrot.slane %v2021, 2
        %v2124 = vrot.slane %v2022, 2
        %v2125 = vsel %vm755, %v2123, %v2124
        %v2126 = vrot.slane %v2023, 2
        %v2127 = vsel %vm755, %v2124, %v2126
        %v2128 = vrot.slane %v2024, 2
        %v2129 = vrot.slane %v2025, 2
        %v2130 = vsel %vm755, %v2128, %v2129
        %v2131 = vrot.slane %v2026, 2
        %v2132 = vsel %vm755, %v2129, %v2131
        %v2133 = vrot.slane %v2027, 2
        %v2134 = vrot.slane %v2028, 2
        %v2135 = vsel %vm755, %v2133, %v2134
        %v2136 = vrot.slane %v2029, 2
        %v2137 = vsel %vm755, %v2134, %v2136
        %v2138 = vrot.slane %v2030, 2
        %v2139 = vrot.slane %v2031, 2
        %v2140 = vsel %vm755, %v2138, %v2139
        %v2141 = vrot.slane %v2032, 2
        %v2142 = vsel %vm755, %v2139, %v2141
        %v2143 = vrot.slane %v2033, 2
        %v2144 = vrot.slane %v2034, 2
        %v2145 = vsel %vm755, %v2143, %v2144
        %v2146 = vrot.slane %v2035, 2
        %v2147 = vsel %vm755, %v2144, %v2146
        %v2148 = vrot.slane %v2036, 2
        %v2149 = vrot.slane %v2037, 2
        %v2150 = vsel %vm755, %v2148, %v2149
        %v2151 = vrot.slane %v2038, 2
        %v2152 = vsel %vm755, %v2149, %v2151
        %v2153 = vrot.slane %v2039, 2
        %v2154 = vrot.slane %v2040, 2
        %v2155 = vsel %vm755, %v2153, %v2154
        %v2156 = vrot.slane %v2041, 2
        %v2157 = vsel %vm755, %v2154, %v2156
        %v2158 = vrot.slane %v2042, 2
        %v2159 = vrot.slane %v2043, 2
        %v2160 = vsel %vm755, %v2158, %v2159
        %v2161 = vrot.slane %v2044, 2
        %v2162 = vsel %vm755, %v2159, %v2161
        %v2163 = vrot.slane %v2045, 2
        %v2164 = vrot.slane %v2046, 2
        %v2165 = vsel %vm755, %v2163, %v2164
        %v2166 = vrot.slane %v2047, 2
        %v2167 = vsel %vm755, %v2164, %v2166
        %v2168 = vrot.slane %v2048, 2
        %v2169 = vrot.slane %v2049, 2
        %v2170 = vsel %vm755, %v2168, %v2169
        %v2171 = vrot.slane %v2050, 2
        %v2172 = vsel %vm755, %v2169, %v2171
        %v2173 = vrot.slane %v2051, 2
        %v2174 = vrot.slane %v2052, 2
        %v2175 = vsel %vm755, %v2173, %v2174
        %v2176 = vrot.slane %v2053, 2
        %v2177 = vsel %vm755, %v2174, %v2176
        %v2178 = vrot.slane %v2054, 2
        %v2179 = vrot.slane %v2055, 2
        %v2180 = vsel %vm755, %v2178, %v2179
        %v2181 = vrot.slane %v2056, 2
        %v2182 = vsel %vm755, %v2179, %v2181
        %v2183 = vrot.slane %v2057, 2
        %v2184 = vrot.slane %v2058, 2
        %v2185 = vsel %vm755, %v2183, %v2184
        %v2186 = vrot.slane %v2059, 2
        %v2187 = vsel %vm755, %v2184, %v2186
        %v2220 = vadd.f32 %v1947, %v2110
        %v2221 = vadd.f32 %v1948, %v2112
        %v2222 = vadd.f32 %v1949, %v2115
        %v2223 = vadd.f32 %v1950, %v2117
        %v2224 = vadd.f32 %v1951, %v2120
        %v2225 = vadd.f32 %v1952, %v2122
        %v2226 = vadd.f32 %v1953, %v2125
        %v2227 = vadd.f32 %v1954, %v2127
        %v2228 = vadd.f32 %v1955, %v2130
        %v2229 = vadd.f32 %v1956, %v2132
        %v2230 = vadd.f32 %v1957, %v2135
        %v2231 = vadd.f32 %v1958, %v2137
        %v2232 = vadd.f32 %v1959, %v2140
        %v2233 = vadd.f32 %v1960, %v2142
        %v2234 = vadd.f32 %v1961, %v2145
        %v2235 = vadd.f32 %v1962, %v2147
        %v2236 = vadd.f32 %v1963, %v2150
        %v2237 = vadd.f32 %v1964, %v2152
        %v2238 = vadd.f32 %v1965, %v2155
        %v2239 = vadd.f32 %v1966, %v2157
        %v2240 = vadd.f32 %v1967, %v2160
        %v2241 = vadd.f32 %v1968, %v2162
        %v2242 = vadd.f32 %v1969, %v2165
        %v2243 = vadd.f32 %v1970, %v2167
        %v2244 = vadd.f32 %v1971, %v2170
        %v2245 = vadd.f32 %v1972, %v2172
        %v2246 = vadd.f32 %v1973, %v2175
        %v2247 = vadd.f32 %v1974, %v2177
        %v2248 = vadd.f32 %v1975, %v2180
        %v2249 = vadd.f32 %v1976, %v2182
        %v2250 = vadd.f32 %v1977, %v2185
        %v2251 = vadd.f32 %v1978, %v2187
        %v2252 = vpack.c.bf16 %v2220, %v2220
        %v2253 = vpack.c.bf16 %v2221, %v2221
        %v2254 = vpack.c.bf16 %v2222, %v2222
        %v2255 = vpack.c.bf16 %v2223, %v2223
        %v2256 = vpack.c.bf16 %v2224, %v2224
        %v2257 = vpack.c.bf16 %v2225, %v2225
        %v2258 = vpack.c.bf16 %v2226, %v2226
        %v2259 = vpack.c.bf16 %v2227, %v2227
        %v2260 = vpack.c.bf16 %v2228, %v2228
        %v2261 = vpack.c.bf16 %v2229, %v2229
        %v2262 = vpack.c.bf16 %v2230, %v2230
        %v2263 = vpack.c.bf16 %v2231, %v2231
        %v2264 = vpack.c.bf16 %v2232, %v2232
        %v2265 = vpack.c.bf16 %v2233, %v2233
        %v2266 = vpack.c.bf16 %v2234, %v2234
        %v2267 = vpack.c.bf16 %v2235, %v2235
        %v2268 = vpack.c.bf16 %v2236, %v2236
        %v2269 = vpack.c.bf16 %v2237, %v2237
        %v2270 = vpack.c.bf16 %v2238, %v2238
        %v2271 = vpack.c.bf16 %v2239, %v2239
        %v2272 = vpack.c.bf16 %v2240, %v2240
        %v2273 = vpack.c.bf16 %v2241, %v2241
        %v2274 = vpack.c.bf16 %v2242, %v2242
        %v2275 = vpack.c.bf16 %v2243, %v2243
        %v2276 = vpack.c.bf16 %v2244, %v2244
        %v2277 = vpack.c.bf16 %v2245, %v2245
        %v2278 = vpack.c.bf16 %v2246, %v2246
        %v2279 = vpack.c.bf16 %v2247, %v2247
        %v2280 = vpack.c.bf16 %v2248, %v2248
        %v2281 = vpack.c.bf16 %v2249, %v2249
        %v2282 = vpack.c.bf16 %v2250, %v2250
        %v2283 = vpack.c.bf16 %v2251, %v2251
        %2284 = vst [vmem:[#allocation2] sm:$0xf] %v2252
        %2285 = vst [vmem:[#allocation2 + $0x8] sm:$0xf] %v2253
        %2286 = vst [vmem:[#allocation2 + $0x10] sm:$0xf] %v2254
        %2287 = vst [vmem:[#allocation2 + $0x18] sm:$0xf] %v2255
        %2288 = vst [vmem:[#allocation2 + $0x20] sm:$0xf] %v2256
        %2289 = vst [vmem:[#allocation2 + $0x28] sm:$0xf] %v2257
        %2290 = vst [vmem:[#allocation2 + $0x30] sm:$0xf] %v2258
        %2291 = vst [vmem:[#allocation2 + $0x38] sm:$0xf] %v2259
        %2292 = vst [vmem:[#allocation2 + $0x40] sm:$0xf] %v2260
        %2293 = vst [vmem:[#allocation2 + $0x48] sm:$0xf] %v2261
        %2294 = vst [vmem:[#allocation2 + $0x50] sm:$0xf] %v2262
        %2295 = vst [vmem:[#allocation2 + $0x58] sm:$0xf] %v2263
        %2296 = vst [vmem:[#allocation2 + $0x60] sm:$0xf] %v2264
        %2297 = vst [vmem:[#allocation2 + $0x68] sm:$0xf] %v2265
        %2298 = vst [vmem:[#allocation2 + $0x70] sm:$0xf] %v2266
        %2299 = vst [vmem:[#allocation2 + $0x78] sm:$0xf] %v2267
        %2300 = vst [vmem:[#allocation2 + $0x80] sm:$0xf] %v2268
        %2301 = vst [vmem:[#allocation2 + $0x88] sm:$0xf] %v2269
        %2302 = vst [vmem:[#allocation2 + $0x90] sm:$0xf] %v2270
        %2303 = vst [vmem:[#allocation2 + $0x98] sm:$0xf] %v2271
        %2304 = vst [vmem:[#allocation2 + $0xa0] sm:$0xf] %v2272
        %2305 = vst [vmem:[#allocation2 + $0xa8] sm:$0xf] %v2273
        %2306 = vst [vmem:[#allocation2 + $0xb0] sm:$0xf] %v2274
        %2307 = vst [vmem:[#allocation2 + $0xb8] sm:$0xf] %v2275
        %2308 = vst [vmem:[#allocation2 + $0xc0] sm:$0xf] %v2276
        %2309 = vst [vmem:[#allocation2 + $0xc8] sm:$0xf] %v2277
        %2310 = vst [vmem:[#allocation2 + $0xd0] sm:$0xf] %v2278
        %2311 = vst [vmem:[#allocation2 + $0xd8] sm:$0xf] %v2279
        %2312 = vst [vmem:[#allocation2 + $0xe0] sm:$0xf] %v2280
        %2313 = vst [vmem:[#allocation2 + $0xe8] sm:$0xf] %v2281
        %2314 = vst [vmem:[#allocation2 + $0xf0] sm:$0xf] %v2282
        %2315 = vst [vmem:[#allocation2 + $0xf8] sm:$0xf] %v2283
        %v2316 = vld [vmem:[%s900] sm:$0xf]
        %v2317 = vld [vmem:[%s900 + $0x4] sm:$0xf]
        %v2318 = vld [vmem:[%s900 + $0x8] sm:$0x1]
        %v2319 = vld [vmem:[%s900 + $0xc] sm:$0xf]
        %v2320 = vld [vmem:[%s900 + $0x10] sm:$0xf]
        %v2321 = vld [vmem:[%s900 + $0x14] sm:$0x1]
        %v2322 = vld [vmem:[%s900 + $0x18] sm:$0xf]
        %v2323 = vld [vmem:[%s900 + $0x1c] sm:$0xf]
        %v2324 = vld [vmem:[%s900 + $0x20] sm:$0x1]
        %v2325 = vld [vmem:[%s900 + $0x24] sm:$0xf]
        %v2326 = vld [vmem:[%s900 + $0x28] sm:$0xf]
        %v2327 = vld [vmem:[%s900 + $0x2c] sm:$0x1]
        %v2328 = vld [vmem:[%s900 + $0x30] sm:$0xf]
        %v2329 = vld [vmem:[%s900 + $0x34] sm:$0xf]
        %v2330 = vld [vmem:[%s900 + $0x38] sm:$0x1]
        %v2331 = vld [vmem:[%s900 + $0x3c] sm:$0xf]
        %v2332 = vld [vmem:[%s900 + $0x40] sm:$0xf]
        %v2333 = vld [vmem:[%s900 + $0x44] sm:$0x1]
        %v2334 = vld [vmem:[%s900 + $0x48] sm:$0xf]
        %v2335 = vld [vmem:[%s900 + $0x4c] sm:$0xf]
        %v2336 = vld [vmem:[%s900 + $0x50] sm:$0x1]
        %v2337 = vld [vmem:[%s900 + $0x54] sm:$0xf]
        %v2338 = vld [vmem:[%s900 + $0x58] sm:$0xf]
        %v2339 = vld [vmem:[%s900 + $0x5c] sm:$0x1]
        %v2340 = vld [vmem:[%s900 + $0x60] sm:$0xf]
        %v2341 = vld [vmem:[%s900 + $0x64] sm:$0xf]
        %v2342 = vld [vmem:[%s900 + $0x68] sm:$0x1]
        %v2343 = vld [vmem:[%s900 + $0x6c] sm:$0xf]
        %v2344 = vld [vmem:[%s900 + $0x70] sm:$0xf]
        %v2345 = vld [vmem:[%s900 + $0x74] sm:$0x1]
        %v2346 = vld [vmem:[%s900 + $0x78] sm:$0xf]
        %v2347 = vld [vmem:[%s900 + $0x7c] sm:$0xf]
        %v2348 = vld [vmem:[%s900 + $0x80] sm:$0x1]
        %v2349 = vld [vmem:[%s900 + $0x84] sm:$0xf]
        %v2350 = vld [vmem:[%s900 + $0x88] sm:$0xf]
        %v2351 = vld [vmem:[%s900 + $0x8c] sm:$0x1]
        %v2352 = vld [vmem:[%s900 + $0x90] sm:$0xf]
        %v2353 = vld [vmem:[%s900 + $0x94] sm:$0xf]
        %v2354 = vld [vmem:[%s900 + $0x98] sm:$0x1]
        %v2355 = vld [vmem:[%s900 + $0x9c] sm:$0xf]
        %v2356 = vld [vmem:[%s900 + $0xa0] sm:$0xf]
        %v2357 = vld [vmem:[%s900 + $0xa4] sm:$0x1]
        %v2358 = vld [vmem:[%s900 + $0xa8] sm:$0xf]
        %v2359 = vld [vmem:[%s900 + $0xac] sm:$0xf]
        %v2360 = vld [vmem:[%s900 + $0xb0] sm:$0x1]
        %v2361 = vld [vmem:[%s900 + $0xb4] sm:$0xf]
        %v2362 = vld [vmem:[%s900 + $0xb8] sm:$0xf]
        %v2363 = vld [vmem:[%s900 + $0xbc] sm:$0x1]
        %vm2364 = vsmask.f32 3328
        %vm2365 = vsmask.f32 7440
        %vm2366 = vmor %vm2364, %vm2365
        %v2368 = vshrl.u32 %v2316, 16
        %v2370 = vrot.slane %v2368, 4
        %v2371 = vshll.u32 %v2316, 16
        %v2373 = vrot.slane %v2371, 5
        %v2374 = vor.u32 %v2370, %v2373
        %v2375 = vrot.slane %v2374, 4
        %v2377 = vshll.u32 %v2317, 16
        %v2379 = vrot.slane %v2377, 5
        %v2380 = vsel %vm2366, %v2375, %v2379
        %v2381 = vshrl.u32 %v2317, 16
        %v2383 = vrot.slane %v2381, 4
        %v2384 = vor.u32 %v2383, %v2379
        %v2385 = vrot.slane %v2384, 4
        %v2387 = vshll.u32 %v2318, 16
        %v2389 = vrot.slane %v2387, 5
        %v2390 = vsel %vm2366, %v2385, %v2389
        %v2392 = vshrl.u32 %v2319, 16
        %v2394 = vrot.slane %v2392, 4
        %v2395 = vshll.u32 %v2319, 16
        %v2397 = vrot.slane %v2395, 5
        %v2398 = vor.u32 %v2394, %v2397
        %v2399 = vrot.slane %v2398, 4
        %v2401 = vshll.u32 %v2320, 16
        %v2403 = vrot.slane %v2401, 5
        %v2404 = vsel %vm2366, %v2399, %v2403
        %v2405 = vshrl.u32 %v2320, 16
        %v2407 = vrot.slane %v2405, 4
        %v2408 = vor.u32 %v2407, %v2403
        %v2409 = vrot.slane %v2408, 4
        %v2411 = vshll.u32 %v2321, 16
        %v2413 = vrot.slane %v2411, 5
        %v2414 = vsel %vm2366, %v2409, %v2413
        %v2416 = vshrl.u32 %v2322, 16
        %v2418 = vrot.slane %v2416, 4
        %v2419 = vshll.u32 %v2322, 16
        %v2421 = vrot.slane %v2419, 5
        %v2422 = vor.u32 %v2418, %v2421
        %v2423 = vrot.slane %v2422, 4
        %v2425 = vshll.u32 %v2323, 16
        %v2427 = vrot.slane %v2425, 5
        %v2428 = vsel %vm2366, %v2423, %v2427
        %v2429 = vshrl.u32 %v2323, 16
        %v2431 = vrot.slane %v2429, 4
        %v2432 = vor.u32 %v2431, %v2427
        %v2433 = vrot.slane %v2432, 4
        %v2435 = vshll.u32 %v2324, 16
        %v2437 = vrot.slane %v2435, 5
        %v2438 = vsel %vm2366, %v2433, %v2437
        %v2440 = vshrl.u32 %v2325, 16
        %v2442 = vrot.slane %v2440, 4
        %v2443 = vshll.u32 %v2325, 16
        %v2445 = vrot.slane %v2443, 5
        %v2446 = vor.u32 %v2442, %v2445
        %v2447 = vrot.slane %v2446, 4
        %v2449 = vshll.u32 %v2326, 16
        %v2451 = vrot.slane %v2449, 5
        %v2452 = vsel %vm2366, %v2447, %v2451
        %v2453 = vshrl.u32 %v2326, 16
        %v2455 = vrot.slane %v2453, 4
        %v2456 = vor.u32 %v2455, %v2451
        %v2457 = vrot.slane %v2456, 4
        %v2459 = vshll.u32 %v2327, 16
        %v2461 = vrot.slane %v2459, 5
        %v2462 = vsel %vm2366, %v2457, %v2461
        %v2464 = vshrl.u32 %v2328, 16
        %v2466 = vrot.slane %v2464, 4
        %v2467 = vshll.u32 %v2328, 16
        %v2469 = vrot.slane %v2467, 5
        %v2470 = vor.u32 %v2466, %v2469
        %v2471 = vrot.slane %v2470, 4
        %v2473 = vshll.u32 %v2329, 16
        %v2475 = vrot.slane %v2473, 5
        %v2476 = vsel %vm2366, %v2471, %v2475
        %v2477 = vshrl.u32 %v2329, 16
        %v2479 = vrot.slane %v2477, 4
        %v2480 = vor.u32 %v2479, %v2475
        %v2481 = vrot.slane %v2480, 4
        %v2483 = vshll.u32 %v2330, 16
        %v2485 = vrot.slane %v2483, 5
        %v2486 = vsel %vm2366, %v2481, %v2485
        %v2488 = vshrl.u32 %v2331, 16
        %v2490 = vrot.slane %v2488, 4
        %v2491 = vshll.u32 %v2331, 16
        %v2493 = vrot.slane %v2491, 5
        %v2494 = vor.u32 %v2490, %v2493
        %v2495 = vrot.slane %v2494, 4
        %v2497 = vshll.u32 %v2332, 16
        %v2499 = vrot.slane %v2497, 5
        %v2500 = vsel %vm2366, %v2495, %v2499
        %v2501 = vshrl.u32 %v2332, 16
        %v2503 = vrot.slane %v2501, 4
        %v2504 = vor.u32 %v2503, %v2499
        %v2505 = vrot.slane %v2504, 4
        %v2507 = vshll.u32 %v2333, 16
        %v2509 = vrot.slane %v2507, 5
        %v2510 = vsel %vm2366, %v2505, %v2509
        %v2512 = vshrl.u32 %v2334, 16
        %v2514 = vrot.slane %v2512, 4
        %v2515 = vshll.u32 %v2334, 16
        %v2517 = vrot.slane %v2515, 5
        %v2518 = vor.u32 %v2514, %v2517
        %v2519 = vrot.slane %v2518, 4
        %v2521 = vshll.u32 %v2335, 16
        %v2523 = vrot.slane %v2521, 5
        %v2524 = vsel %vm2366, %v2519, %v2523
        %v2525 = vshrl.u32 %v2335, 16
        %v2527 = vrot.slane %v2525, 4
        %v2528 = vor.u32 %v2527, %v2523
        %v2529 = vrot.slane %v2528, 4
        %v2531 = vshll.u32 %v2336, 16
        %v2533 = vrot.slane %v2531, 5
        %v2534 = vsel %vm2366, %v2529, %v2533
        %v2536 = vshrl.u32 %v2337, 16
        %v2538 = vrot.slane %v2536, 4
        %v2539 = vshll.u32 %v2337, 16
        %v2541 = vrot.slane %v2539, 5
        %v2542 = vor.u32 %v2538, %v2541
        %v2543 = vrot.slane %v2542, 4
        %v2545 = vshll.u32 %v2338, 16
        %v2547 = vrot.slane %v2545, 5
        %v2548 = vsel %vm2366, %v2543, %v2547
        %v2549 = vshrl.u32 %v2338, 16
        %v2551 = vrot.slane %v2549, 4
        %v2552 = vor.u32 %v2551, %v2547
        %v2553 = vrot.slane %v2552, 4
        %v2555 = vshll.u32 %v2339, 16
        %v2557 = vrot.slane %v2555, 5
        %v2558 = vsel %vm2366, %v2553, %v2557
        %v2560 = vshrl.u32 %v2340, 16
        %v2562 = vrot.slane %v2560, 4
        %v2563 = vshll.u32 %v2340, 16
        %v2565 = vrot.slane %v2563, 5
        %v2566 = vor.u32 %v2562, %v2565
        %v2567 = vrot.slane %v2566, 4
        %v2569 = vshll.u32 %v2341, 16
        %v2571 = vrot.slane %v2569, 5
        %v2572 = vsel %vm2366, %v2567, %v2571
        %v2573 = vshrl.u32 %v2341, 16
        %v2575 = vrot.slane %v2573, 4
        %v2576 = vor.u32 %v2575, %v2571
        %v2577 = vrot.slane %v2576, 4
        %v2579 = vshll.u32 %v2342, 16
        %v2581 = vrot.slane %v2579, 5
        %v2582 = vsel %vm2366, %v2577, %v2581
        %v2584 = vshrl.u32 %v2343, 16
        %v2586 = vrot.slane %v2584, 4
        %v2587 = vshll.u32 %v2343, 16
        %v2589 = vrot.slane %v2587, 5
        %v2590 = vor.u32 %v2586, %v2589
        %v2591 = vrot.slane %v2590, 4
        %v2593 = vshll.u32 %v2344, 16
        %v2595 = vrot.slane %v2593, 5
        %v2596 = vsel %vm2366, %v2591, %v2595
        %v2597 = vshrl.u32 %v2344, 16
        %v2599 = vrot.slane %v2597, 4
        %v2600 = vor.u32 %v2599, %v2595
        %v2601 = vrot.slane %v2600, 4
        %v2603 = vshll.u32 %v2345, 16
        %v2605 = vrot.slane %v2603, 5
        %v2606 = vsel %vm2366, %v2601, %v2605
        %v2608 = vshrl.u32 %v2346, 16
        %v2610 = vrot.slane %v2608, 4
        %v2611 = vshll.u32 %v2346, 16
        %v2613 = vrot.slane %v2611, 5
        %v2614 = vor.u32 %v2610, %v2613
        %v2615 = vrot.slane %v2614, 4
        %v2617 = vshll.u32 %v2347, 16
        %v2619 = vrot.slane %v2617, 5
        %v2620 = vsel %vm2366, %v2615, %v2619
        %v2621 = vshrl.u32 %v2347, 16
        %v2623 = vrot.slane %v2621, 4
        %v2624 = vor.u32 %v2623, %v2619
        %v2625 = vrot.slane %v2624, 4
        %v2627 = vshll.u32 %v2348, 16
        %v2629 = vrot.slane %v2627, 5
        %v2630 = vsel %vm2366, %v2625, %v2629
        %v2632 = vshrl.u32 %v2349, 16
        %v2634 = vrot.slane %v2632, 4
        %v2635 = vshll.u32 %v2349, 16
        %v2637 = vrot.slane %v2635, 5
        %v2638 = vor.u32 %v2634, %v2637
        %v2639 = vrot.slane %v2638, 4
        %v2641 = vshll.u32 %v2350, 16
        %v2643 = vrot.slane %v2641, 5
        %v2644 = vsel %vm2366, %v2639, %v2643
        %v2645 = vshrl.u32 %v2350, 16
        %v2647 = vrot.slane %v2645, 4
        %v2648 = vor.u32 %v2647, %v2643
        %v2649 = vrot.slane %v2648, 4
        %v2651 = vshll.u32 %v2351, 16
        %v2653 = vrot.slane %v2651, 5
        %v2654 = vsel %vm2366, %v2649, %v2653
        %v2656 = vshrl.u32 %v2352, 16
        %v2658 = vrot.slane %v2656, 4
        %v2659 = vshll.u32 %v2352, 16
        %v2661 = vrot.slane %v2659, 5
        %v2662 = vor.u32 %v2658, %v2661
        %v2663 = vrot.slane %v2662, 4
        %v2665 = vshll.u32 %v2353, 16
        %v2667 = vrot.slane %v2665, 5
        %v2668 = vsel %vm2366, %v2663, %v2667
        %v2669 = vshrl.u32 %v2353, 16
        %v2671 = vrot.slane %v2669, 4
        %v2672 = vor.u32 %v2671, %v2667
        %v2673 = vrot.slane %v2672, 4
        %v2675 = vshll.u32 %v2354, 16
        %v2677 = vrot.slane %v2675, 5
        %v2678 = vsel %vm2366, %v2673, %v2677
        %v2680 = vshrl.u32 %v2355, 16
        %v2682 = vrot.slane %v2680, 4
        %v2683 = vshll.u32 %v2355, 16
        %v2685 = vrot.slane %v2683, 5
        %v2686 = vor.u32 %v2682, %v2685
        %v2687 = vrot.slane %v2686, 4
        %v2689 = vshll.u32 %v2356, 16
        %v2691 = vrot.slane %v2689, 5
        %v2692 = vsel %vm2366, %v2687, %v2691
        %v2693 = vshrl.u32 %v2356, 16
        %v2695 = vrot.slane %v2693, 4
        %v2696 = vor.u32 %v2695, %v2691
        %v2697 = vrot.slane %v2696, 4
        %v2699 = vshll.u32 %v2357, 16
        %v2701 = vrot.slane %v2699, 5
        %v2702 = vsel %vm2366, %v2697, %v2701
        %v2704 = vshrl.u32 %v2358, 16
        %v2706 = vrot.slane %v2704, 4
        %v2707 = vshll.u32 %v2358, 16
        %v2709 = vrot.slane %v2707, 5
        %v2710 = vor.u32 %v2706, %v2709
        %v2711 = vrot.slane %v2710, 4
        %v2713 = vshll.u32 %v2359, 16
        %v2715 = vrot.slane %v2713, 5
        %v2716 = vsel %vm2366, %v2711, %v2715
        %v2717 = vshrl.u32 %v2359, 16
        %v2719 = vrot.slane %v2717, 4
        %v2720 = vor.u32 %v2719, %v2715
        %v2721 = vrot.slane %v2720, 4
        %v2723 = vshll.u32 %v2360, 16
        %v2725 = vrot.slane %v2723, 5
        %v2726 = vsel %vm2366, %v2721, %v2725
        %v2728 = vshrl.u32 %v2361, 16
        %v2730 = vrot.slane %v2728, 4
        %v2731 = vshll.u32 %v2361, 16
        %v2733 = vrot.slane %v2731, 5
        %v2734 = vor.u32 %v2730, %v2733
        %v2735 = vrot.slane %v2734, 4
        %v2737 = vshll.u32 %v2362, 16
        %v2739 = vrot.slane %v2737, 5
        %v2740 = vsel %vm2366, %v2735, %v2739
        %v2741 = vshrl.u32 %v2362, 16
        %v2743 = vrot.slane %v2741, 4
        %v2744 = vor.u32 %v2743, %v2739
        %v2745 = vrot.slane %v2744, 4
        %v2747 = vshll.u32 %v2363, 16
        %v2749 = vrot.slane %v2747, 5
        %v2750 = vsel %vm2366, %v2745, %v2749
        %2783 = vst [vmem:[#allocation2 + $0x4] sm:$0xf] %v2380
        %2784 = vst [vmem:[#allocation2 + $0xc] sm:$0xf] %v2390
        %2785 = vst [vmem:[#allocation2 + $0x14] sm:$0xf] %v2404
        %2786 = vst [vmem:[#allocation2 + $0x1c] sm:$0xf] %v2414
        %2787 = vst [vmem:[#allocation2 + $0x24] sm:$0xf] %v2428
        %2788 = vst [vmem:[#allocation2 + $0x2c] sm:$0xf] %v2438
        %2789 = vst [vmem:[#allocation2 + $0x34] sm:$0xf] %v2452
        %2790 = vst [vmem:[#allocation2 + $0x3c] sm:$0xf] %v2462
        %2791 = vst [vmem:[#allocation2 + $0x44] sm:$0xf] %v2476
        %2792 = vst [vmem:[#allocation2 + $0x4c] sm:$0xf] %v2486
        %2793 = vst [vmem:[#allocation2 + $0x54] sm:$0xf] %v2500
        %2794 = vst [vmem:[#allocation2 + $0x5c] sm:$0xf] %v2510
        %2795 = vst [vmem:[#allocation2 + $0x64] sm:$0xf] %v2524
        %2796 = vst [vmem:[#allocation2 + $0x6c] sm:$0xf] %v2534
        %2797 = vst [vmem:[#allocation2 + $0x74] sm:$0xf] %v2548
        %2798 = vst [vmem:[#allocation2 + $0x7c] sm:$0xf] %v2558
        %2799 = vst [vmem:[#allocation2 + $0x84] sm:$0xf] %v2572
        %2800 = vst [vmem:[#allocation2 + $0x8c] sm:$0xf] %v2582
        %2801 = vst [vmem:[#allocation2 + $0x94] sm:$0xf] %v2596
        %2802 = vst [vmem:[#allocation2 + $0x9c] sm:$0xf] %v2606
        %2803 = vst [vmem:[#allocation2 + $0xa4] sm:$0xf] %v2620
        %2804 = vst [vmem:[#allocation2 + $0xac] sm:$0xf] %v2630
        %2805 = vst [vmem:[#allocation2 + $0xb4] sm:$0xf] %v2644
        %2806 = vst [vmem:[#allocation2 + $0xbc] sm:$0xf] %v2654
        %2807 = vst [vmem:[#allocation2 + $0xc4] sm:$0xf] %v2668
        %2808 = vst [vmem:[#allocation2 + $0xcc] sm:$0xf] %v2678
        %2809 = vst [vmem:[#allocation2 + $0xd4] sm:$0xf] %v2692
        %2810 = vst [vmem:[#allocation2 + $0xdc] sm:$0xf] %v2702
        %2811 = vst [vmem:[#allocation2 + $0xe4] sm:$0xf] %v2716
        %2812 = vst [vmem:[#allocation2 + $0xec] sm:$0xf] %v2726
        %2813 = vst [vmem:[#allocation2 + $0xf4] sm:$0xf] %v2740
        %2814 = vst [vmem:[#allocation2 + $0xfc] sm:$0xf] %v2750
      $region40: #{depthwise_separable_conv.1} parent=35 // pred_fallthru
        _
      %v2815 = vld [vmem:[#allocation2] sm:$0xff]
      %v2816 = vld [vmem:[#allocation2 + $0x8] sm:$0xff]
      %v2817 = vld [vmem:[#allocation2 + $0x10] sm:$0xff]
      %v2818 = vld [vmem:[#allocation2 + $0x18] sm:$0xff]
      %v2819 = vld [vmem:[#allocation2 + $0x20] sm:$0xff]
      %v2820 = vld [vmem:[#allocation2 + $0x28] sm:$0xff]
      %v2821 = vld [vmem:[#allocation2 + $0x30] sm:$0xff]
      %v2822 = vld [vmem:[#allocation2 + $0x38] sm:$0xff]
      %v2823 = vld [vmem:[#allocation2 + $0x40] sm:$0xff]
      %v2824 = vld [vmem:[#allocation2 + $0x48] sm:$0xff]
      %v2825 = vld [vmem:[#allocation2 + $0x50] sm:$0xff]
      %v2826 = vld [vmem:[#allocation2 + $0x58] sm:$0xff]
      %v2827 = vld [vmem:[#allocation2 + $0x60] sm:$0xff]
      %v2828 = vld [vmem:[#allocation2 + $0x68] sm:$0xff]
      %v2829 = vld [vmem:[#allocation2 + $0x70] sm:$0xff]
      %v2830 = vld [vmem:[#allocation2 + $0x78] sm:$0xff]
      %v2831 = vld [vmem:[#allocation2 + $0x80] sm:$0xff]
      %v2832 = vld [vmem:[#allocation2 + $0x88] sm:$0xff]
      %v2833 = vld [vmem:[#allocation2 + $0x90] sm:$0xff]
      %v2834 = vld [vmem:[#allocation2 + $0x98] sm:$0xff]
      %v2835 = vld [vmem:[#allocation2 + $0xa0] sm:$0xff]
      %v2836 = vld [vmem:[#allocation2 + $0xa8] sm:$0xff]
      %v2837 = vld [vmem:[#allocation2 + $0xb0] sm:$0xff]
      %v2838 = vld [vmem:[#allocation2 + $0xb8] sm:$0xff]
      %v2839 = vld [vmem:[#allocation2 + $0xc0] sm:$0xff]
      %v2840 = vld [vmem:[#allocation2 + $0xc8] sm:$0xff]
      %v2841 = vld [vmem:[#allocation2 + $0xd0] sm:$0xff]
      %v2842 = vld [vmem:[#allocation2 + $0xd8] sm:$0xff]
      %v2843 = vld [vmem:[#allocation2 + $0xe0] sm:$0xff]
      %v2844 = vld [vmem:[#allocation2 + $0xe8] sm:$0xff]
      %v2845 = vld [vmem:[#allocation2 + $0xf0] sm:$0xff]
      %v2846 = vld [vmem:[#allocation2 + $0xf8] sm:$0xff]
      %v2847 = vld [vmem:[%s237] sm:$0xf]
      %v2848 = vld [vmem:[%s237 + $0x4] sm:$0xf]
      %v2849 = vld [vmem:[%s237 + $0x8] sm:$0xf]
      %v2850 = vld [vmem:[%s237 + $0xc] sm:$0xf]
      %v2851 = vld [vmem:[%s237 + $0x10] sm:$0xf]
      %v2852 = vld [vmem:[%s237 + $0x14] sm:$0xf]
      %v2853 = vld [vmem:[%s237 + $0x18] sm:$0xf]
      %v2854 = vld [vmem:[%s237 + $0x1c] sm:$0xf]
      %v2855 = vld [vmem:[%s237 + $0x20] sm:$0xf]
      %v2856 = vld [vmem:[%s237 + $0x24] sm:$0xf]
      %v2857 = vld [vmem:[%s237 + $0x28] sm:$0xf]
      %v2858 = vld [vmem:[%s237 + $0x2c] sm:$0xf]
      %v2859 = vld [vmem:[%s237 + $0x30] sm:$0xf]
      %v2860 = vld [vmem:[%s237 + $0x34] sm:$0xf]
      %v2861 = vld [vmem:[%s237 + $0x38] sm:$0xf]
      %v2862 = vld [vmem:[%s237 + $0x3c] sm:$0xf]
      %v2863 = vld [vmem:[%s237 + $0x40] sm:$0xf]
      %v2864 = vld [vmem:[%s237 + $0x44] sm:$0xf]
      %v2865 = vld [vmem:[%s237 + $0x48] sm:$0xf]
      %v2866 = vld [vmem:[%s237 + $0x4c] sm:$0xf]
      %v2867 = vld [vmem:[%s237 + $0x50] sm:$0xf]
      %v2868 = vld [vmem:[%s237 + $0x54] sm:$0xf]
      %v2869 = vld [vmem:[%s237 + $0x58] sm:$0xf]
      %v2870 = vld [vmem:[%s237 + $0x5c] sm:$0xf]
      %v2871 = vld [vmem:[%s237 + $0x60] sm:$0xf]
      %v2872 = vld [vmem:[%s237 + $0x64] sm:$0xf]
      %v2873 = vld [vmem:[%s237 + $0x68] sm:$0xf]
      %v2874 = vld [vmem:[%s237 + $0x6c] sm:$0xf]
      %v2875 = vld [vmem:[%s237 + $0x70] sm:$0xf]
      %v2876 = vld [vmem:[%s237 + $0x74] sm:$0xf]
      %v2877 = vld [vmem:[%s237 + $0x78] sm:$0xf]
      %v2878 = vld [vmem:[%s237 + $0x7c] sm:$0xf]
      %v2879 = vld [vmem:[%s240] sm:$0x1]
      %v2881 = vperm.slane %v2879, 0
      %v2915 = vunpack.c.l.b16 %v2815
      %v2916 = vunpack.c.h.b16 %v2815
      %v2917 = vunpack.c.l.b16 %v2816
      %v2918 = vunpack.c.h.b16 %v2816
      %v2919 = vunpack.c.l.b16 %v2817
      %v2920 = vunpack.c.h.b16 %v2817
      %v2921 = vunpack.c.l.b16 %v2818
      %v2922 = vunpack.c.h.b16 %v2818
      %v2923 = vunpack.c.l.b16 %v2819
      %v2924 = vunpack.c.h.b16 %v2819
      %v2925 = vunpack.c.l.b16 %v2820
      %v2926 = vunpack.c.h.b16 %v2820
      %v2927 = vunpack.c.l.b16 %v2821
      %v2928 = vunpack.c.h.b16 %v2821
      %v2929 = vunpack.c.l.b16 %v2822
      %v2930 = vunpack.c.h.b16 %v2822
      %v2931 = vunpack.c.l.b16 %v2823
      %v2932 = vunpack.c.h.b16 %v2823
      %v2933 = vunpack.c.l.b16 %v2824
      %v2934 = vunpack.c.h.b16 %v2824
      %v2935 = vunpack.c.l.b16 %v2825
      %v2936 = vunpack.c.h.b16 %v2825
      %v2937 = vunpack.c.l.b16 %v2826
      %v2938 = vunpack.c.h.b16 %v2826
      %v2939 = vunpack.c.l.b16 %v2827
      %v2940 = vunpack.c.h.b16 %v2827
      %v2941 = vunpack.c.l.b16 %v2828
      %v2942 = vunpack.c.h.b16 %v2828
      %v2943 = vunpack.c.l.b16 %v2829
      %v2944 = vunpack.c.h.b16 %v2829
      %v2945 = vunpack.c.l.b16 %v2830
      %v2946 = vunpack.c.h.b16 %v2830
      %v2947 = vunpack.c.l.b16 %v2831
      %v2948 = vunpack.c.h.b16 %v2831
      %v2949 = vunpack.c.l.b16 %v2832
      %v2950 = vunpack.c.h.b16 %v2832
      %v2951 = vunpack.c.l.b16 %v2833
      %v2952 = vunpack.c.h.b16 %v2833
      %v2953 = vunpack.c.l.b16 %v2834
      %v2954 = vunpack.c.h.b16 %v2834
      %v2955 = vunpack.c.l.b16 %v2835
      %v2956 = vunpack.c.h.b16 %v2835
      %v2957 = vunpack.c.l.b16 %v2836
      %v2958 = vunpack.c.h.b16 %v2836
      %v2959 = vunpack.c.l.b16 %v2837
      %v2960 = vunpack.c.h.b16 %v2837
      %v2961 = vunpack.c.l.b16 %v2838
      %v2962 = vunpack.c.h.b16 %v2838
      %v2963 = vunpack.c.l.b16 %v2839
      %v2964 = vunpack.c.h.b16 %v2839
      %v2965 = vunpack.c.l.b16 %v2840
      %v2966 = vunpack.c.h.b16 %v2840
      %v2967 = vunpack.c.l.b16 %v2841
      %v2968 = vunpack.c.h.b16 %v2841
      %v2969 = vunpack.c.l.b16 %v2842
      %v2970 = vunpack.c.h.b16 %v2842
      %v2971 = vunpack.c.l.b16 %v2843
      %v2972 = vunpack.c.h.b16 %v2843
      %v2973 = vunpack.c.l.b16 %v2844
      %v2974 = vunpack.c.h.b16 %v2844
      %v2975 = vunpack.c.l.b16 %v2845
      %v2976 = vunpack.c.h.b16 %v2845
      %v2977 = vunpack.c.l.b16 %v2846
      %v2978 = vunpack.c.h.b16 %v2846
      %v2979 = vpack.c.b16 %v2917, %v2915
      %v2980 = vpack.c.b16 %v2918, %v2916
      %v2981 = vpack.c.b16 %v2921, %v2919
      %v2982 = vpack.c.b16 %v2922, %v2920
      %v2983 = vpack.c.b16 %v2925, %v2923
      %v2984 = vpack.c.b16 %v2926, %v2924
      %v2985 = vpack.c.b16 %v2929, %v2927
      %v2986 = vpack.c.b16 %v2930, %v2928
      %v2987 = vpack.c.b16 %v2933, %v2931
      %v2988 = vpack.c.b16 %v2934, %v2932
      %v2989 = vpack.c.b16 %v2937, %v2935
      %v2990 = vpack.c.b16 %v2938, %v2936
      %v2991 = vpack.c.b16 %v2941, %v2939
      %v2992 = vpack.c.b16 %v2942, %v2940
      %v2993 = vpack.c.b16 %v2945, %v2943
      %v2994 = vpack.c.b16 %v2946, %v2944
      %v2995 = vpack.c.b16 %v2949, %v2947
      %v2996 = vpack.c.b16 %v2950, %v2948
      %v2997 = vpack.c.b16 %v2953, %v2951
      %v2998 = vpack.c.b16 %v2954, %v2952
      %v2999 = vpack.c.b16 %v2957, %v2955
      %v3000 = vpack.c.b16 %v2958, %v2956
      %v3001 = vpack.c.b16 %v2961, %v2959
      %v3002 = vpack.c.b16 %v2962, %v2960
      %v3003 = vpack.c.b16 %v2965, %v2963
      %v3004 = vpack.c.b16 %v2966, %v2964
      %v3005 = vpack.c.b16 %v2969, %v2967
      %v3006 = vpack.c.b16 %v2970, %v2968
      %v3007 = vpack.c.b16 %v2973, %v2971
      %v3008 = vpack.c.b16 %v2974, %v2972
      %v3009 = vpack.c.b16 %v2977, %v2975
      %v3010 = vpack.c.b16 %v2978, %v2976
      %v3075 = vunpack.c.l.b16 %v2847
      %v3076 = vunpack.c.l.b16 %v2848
      %v3077 = vunpack.c.l.b16 %v2849
      %v3078 = vunpack.c.l.b16 %v2850
      %v3079 = vunpack.c.l.b16 %v2851
      %v3080 = vunpack.c.l.b16 %v2852
      %v3081 = vunpack.c.l.b16 %v2853
      %v3082 = vunpack.c.l.b16 %v2854
      %v3083 = vunpack.c.l.b16 %v2855
      %v3084 = vunpack.c.l.b16 %v2856
      %v3085 = vunpack.c.l.b16 %v2857
      %v3086 = vunpack.c.l.b16 %v2858
      %v3087 = vunpack.c.l.b16 %v2859
      %v3088 = vunpack.c.l.b16 %v2860
      %v3089 = vunpack.c.l.b16 %v2861
      %v3090 = vunpack.c.l.b16 %v2862
      %v3091 = vunpack.c.l.b16 %v2863
      %v3092 = vunpack.c.l.b16 %v2864
      %v3093 = vunpack.c.l.b16 %v2865
      %v3094 = vunpack.c.l.b16 %v2866
      %v3095 = vunpack.c.l.b16 %v2867
      %v3096 = vunpack.c.l.b16 %v2868
      %v3097 = vunpack.c.l.b16 %v2869
      %v3098 = vunpack.c.l.b16 %v2870
      %v3099 = vunpack.c.l.b16 %v2871
      %v3100 = vunpack.c.l.b16 %v2872
      %v3101 = vunpack.c.l.b16 %v2873
      %v3102 = vunpack.c.l.b16 %v2874
      %v3103 = vunpack.c.l.b16 %v2875
      %v3104 = vunpack.c.l.b16 %v2876
      %v3105 = vunpack.c.l.b16 %v2877
      %v3106 = vunpack.c.l.b16 %v2878
      %v3107 = vpack.c.b16 %v3076, %v3075
      %v3108 = vpack.c.b16 %v3078, %v3077
      %v3109 = vpack.c.b16 %v3080, %v3079
      %v3110 = vpack.c.b16 %v3082, %v3081
      %v3111 = vpack.c.b16 %v3084, %v3083
      %v3112 = vpack.c.b16 %v3086, %v3085
      %v3113 = vpack.c.b16 %v3088, %v3087
      %v3114 = vpack.c.b16 %v3090, %v3089
      %v3115 = vpack.c.b16 %v3092, %v3091
      %v3116 = vpack.c.b16 %v3094, %v3093
      %v3117 = vpack.c.b16 %v3096, %v3095
      %v3118 = vpack.c.b16 %v3098, %v3097
      %v3119 = vpack.c.b16 %v3100, %v3099
      %v3120 = vpack.c.b16 %v3102, %v3101
      %v3121 = vpack.c.b16 %v3104, %v3103
      %v3122 = vpack.c.b16 %v3106, %v3105
      %3139 = vmatpush.bf16.msra.mxu0 %v3114
      %3140 = vmatpush.bf16.msra.mxu0 %v3113
      %3141 = vmatpush.bf16.msra.mxu0 %v3112
      %3142 = vmatpush.bf16.msra.mxu0 %v3111
      %3143 = vmatpush.bf16.msra.mxu0 %v3110
      %3144 = vmatpush.bf16.msra.mxu0 %v3109
      %3145 = vmatpush.bf16.msra.mxu0 %v3108
      %3146 = vmatpush.bf16.msra.mxu0 %v3107
      %3147 = vmatmul.bf16.gmra.mxu0 %v2979
      %v3148 = vpop.f32.mrf.mxu0
      %v3149 = vadd.f32 %v2881, %v3148
      %v3150 = vpop.f32.mrf.mxu0
      %v3151 = vadd.f32 %v2881, %v3150
      %3152 = vmatmul.bf16.gmra.mxu0 %v2981
      %v3153 = vpop.f32.mrf.mxu0
      %v3154 = vadd.f32 %v2881, %v3153
      %v3155 = vpop.f32.mrf.mxu0
      %v3156 = vadd.f32 %v2881, %v3155
      %3157 = vmatmul.bf16.gmra.mxu0 %v2983
      %v3158 = vpop.f32.mrf.mxu0
      %v3159 = vadd.f32 %v2881, %v3158
      %v3160 = vpop.f32.mrf.mxu0
      %v3161 = vadd.f32 %v2881, %v3160
      %3162 = vmatmul.bf16.gmra.mxu0 %v2985
      %v3163 = vpop.f32.mrf.mxu0
      %v3164 = vadd.f32 %v2881, %v3163
      %v3165 = vpop.f32.mrf.mxu0
      %v3166 = vadd.f32 %v2881, %v3165
      %3167 = vmatmul.bf16.gmra.mxu0 %v2987
      %v3168 = vpop.f32.mrf.mxu0
      %v3169 = vadd.f32 %v2881, %v3168
      %v3170 = vpop.f32.mrf.mxu0
      %v3171 = vadd.f32 %v2881, %v3170
      %3172 = vmatmul.bf16.gmra.mxu0 %v2989
      %v3173 = vpop.f32.mrf.mxu0
      %v3174 = vadd.f32 %v2881, %v3173
      %v3175 = vpop.f32.mrf.mxu0
      %v3176 = vadd.f32 %v2881, %v3175
      %3177 = vmatmul.bf16.gmra.mxu0 %v2991
      %v3178 = vpop.f32.mrf.mxu0
      %v3179 = vadd.f32 %v2881, %v3178
      %v3180 = vpop.f32.mrf.mxu0
      %v3181 = vadd.f32 %v2881, %v3180
      %3182 = vmatmul.bf16.gmra.mxu0 %v2993
      %v3183 = vpop.f32.mrf.mxu0
      %v3184 = vadd.f32 %v2881, %v3183
      %v3185 = vpop.f32.mrf.mxu0
      %v3186 = vadd.f32 %v2881, %v3185
      %3187 = vmatmul.bf16.gmra.mxu0 %v2995
      %v3188 = vpop.f32.mrf.mxu0
      %v3189 = vadd.f32 %v2881, %v3188
      %v3190 = vpop.f32.mrf.mxu0
      %v3191 = vadd.f32 %v2881, %v3190
      %3192 = vmatmul.bf16.gmra.mxu0 %v2997
      %v3193 = vpop.f32.mrf.mxu0
      %v3194 = vadd.f32 %v2881, %v3193
      %v3195 = vpop.f32.mrf.mxu0
      %v3196 = vadd.f32 %v2881, %v3195
      %3197 = vmatmul.bf16.gmra.mxu0 %v2999
      %v3198 = vpop.f32.mrf.mxu0
      %v3199 = vadd.f32 %v2881, %v3198
      %v3200 = vpop.f32.mrf.mxu0
      %v3201 = vadd.f32 %v2881, %v3200
      %3202 = vmatmul.bf16.gmra.mxu0 %v3001
      %v3203 = vpop.f32.mrf.mxu0
      %v3204 = vadd.f32 %v2881, %v3203
      %v3205 = vpop.f32.mrf.mxu0
      %v3206 = vadd.f32 %v2881, %v3205
      %3207 = vmatmul.bf16.gmra.mxu0 %v3003
      %v3208 = vpop.f32.mrf.mxu0
      %v3209 = vadd.f32 %v2881, %v3208
      %v3210 = vpop.f32.mrf.mxu0
      %v3211 = vadd.f32 %v2881, %v3210
      %3212 = vmatmul.bf16.gmra.mxu0 %v3005
      %v3213 = vpop.f32.mrf.mxu0
      %v3214 = vadd.f32 %v2881, %v3213
      %v3215 = vpop.f32.mrf.mxu0
      %v3216 = vadd.f32 %v2881, %v3215
      %3217 = vmatmul.bf16.gmra.mxu0 %v3007
      %v3218 = vpop.f32.mrf.mxu0
      %v3219 = vadd.f32 %v2881, %v3218
      %v3220 = vpop.f32.mrf.mxu0
      %v3221 = vadd.f32 %v2881, %v3220
      %3222 = vmatmul.bf16.gmra.mxu0 %v3009
      %v3223 = vpop.f32.mrf.mxu0
      %v3224 = vadd.f32 %v2881, %v3223
      %v3225 = vpop.f32.mrf.mxu0
      %v3226 = vadd.f32 %v2881, %v3225
      %3227 = vdwg.mxu0
      %3228 = vmatpush.bf16.msra.mxu0 %v3122
      %3229 = vmatpush.bf16.msra.mxu0 %v3121
      %3230 = vmatpush.bf16.msra.mxu0 %v3120
      %3231 = vmatpush.bf16.msra.mxu0 %v3119
      %3232 = vmatpush.bf16.msra.mxu0 %v3118
      %3233 = vmatpush.bf16.msra.mxu0 %v3117
      %3234 = vmatpush.bf16.msra.mxu0 %v3116
      %3235 = vmatpush.bf16.msra.mxu0 %v3115
      %3236 = vmatmul.bf16.gmra.mxu0 %v2980
      %v3237 = vpop.f32.mrf.mxu0
      %v3238 = vadd.f32 %v3149, %v3237
      %v3239 = vpop.f32.mrf.mxu0
      %v3240 = vadd.f32 %v3151, %v3239
      %3241 = vmatmul.bf16.gmra.mxu0 %v2982
      %v3242 = vpop.f32.mrf.mxu0
      %v3243 = vadd.f32 %v3154, %v3242
      %v3244 = vpop.f32.mrf.mxu0
      %v3245 = vadd.f32 %v3156, %v3244
      %3246 = vmatmul.bf16.gmra.mxu0 %v2984
      %v3247 = vpop.f32.mrf.mxu0
      %v3248 = vadd.f32 %v3159, %v3247
      %v3249 = vpop.f32.mrf.mxu0
      %v3250 = vadd.f32 %v3161, %v3249
      %3251 = vmatmul.bf16.gmra.mxu0 %v2986
      %v3252 = vpop.f32.mrf.mxu0
      %v3253 = vadd.f32 %v3164, %v3252
      %v3254 = vpop.f32.mrf.mxu0
      %v3255 = vadd.f32 %v3166, %v3254
      %3256 = vmatmul.bf16.gmra.mxu0 %v2988
      %v3257 = vpop.f32.mrf.mxu0
      %v3258 = vadd.f32 %v3169, %v3257
      %v3259 = vpop.f32.mrf.mxu0
      %v3260 = vadd.f32 %v3171, %v3259
      %3261 = vmatmul.bf16.gmra.mxu0 %v2990
      %v3262 = vpop.f32.mrf.mxu0
      %v3263 = vadd.f32 %v3174, %v3262
      %v3264 = vpop.f32.mrf.mxu0
      %v3265 = vadd.f32 %v3176, %v3264
      %3266 = vmatmul.bf16.gmra.mxu0 %v2992
      %v3267 = vpop.f32.mrf.mxu0
      %v3268 = vadd.f32 %v3179, %v3267
      %v3269 = vpop.f32.mrf.mxu0
      %v3270 = vadd.f32 %v3181, %v3269
      %3271 = vmatmul.bf16.gmra.mxu0 %v2994
      %v3272 = vpop.f32.mrf.mxu0
      %v3273 = vadd.f32 %v3184, %v3272
      %v3274 = vpop.f32.mrf.mxu0
      %v3275 = vadd.f32 %v3186, %v3274
      %3276 = vmatmul.bf16.gmra.mxu0 %v2996
      %v3277 = vpop.f32.mrf.mxu0
      %v3278 = vadd.f32 %v3189, %v3277
      %v3279 = vpop.f32.mrf.mxu0
      %v3280 = vadd.f32 %v3191, %v3279
      %3281 = vmatmul.bf16.gmra.mxu0 %v2998
      %v3282 = vpop.f32.mrf.mxu0
      %v3283 = vadd.f32 %v3194, %v3282
      %v3284 = vpop.f32.mrf.mxu0
      %v3285 = vadd.f32 %v3196, %v3284
      %3286 = vmatmul.bf16.gmra.mxu0 %v3000
      %v3287 = vpop.f32.mrf.mxu0
      %v3288 = vadd.f32 %v3199, %v3287
      %v3289 = vpop.f32.mrf.mxu0
      %v3290 = vadd.f32 %v3201, %v3289
      %3291 = vmatmul.bf16.gmra.mxu0 %v3002
      %v3292 = vpop.f32.mrf.mxu0
      %v3293 = vadd.f32 %v3204, %v3292
      %v3294 = vpop.f32.mrf.mxu0
      %v3295 = vadd.f32 %v3206, %v3294
      %3296 = vmatmul.bf16.gmra.mxu0 %v3004
      %v3297 = vpop.f32.mrf.mxu0
      %v3298 = vadd.f32 %v3209, %v3297
      %v3299 = vpop.f32.mrf.mxu0
      %v3300 = vadd.f32 %v3211, %v3299
      %3301 = vmatmul.bf16.gmra.mxu0 %v3006
      %v3302 = vpop.f32.mrf.mxu0
      %v3303 = vadd.f32 %v3214, %v3302
      %v3304 = vpop.f32.mrf.mxu0
      %v3305 = vadd.f32 %v3216, %v3304
      %3306 = vmatmul.bf16.gmra.mxu0 %v3008
      %v3307 = vpop.f32.mrf.mxu0
      %v3308 = vadd.f32 %v3219, %v3307
      %v3309 = vpop.f32.mrf.mxu0
      %v3310 = vadd.f32 %v3221, %v3309
      %3311 = vmatmul.bf16.gmra.mxu0 %v3010
      %v3312 = vpop.f32.mrf.mxu0
      %v3313 = vadd.f32 %v3224, %v3312
      %v3314 = vpop.f32.mrf.mxu0
      %v3315 = vadd.f32 %v3226, %v3314
      %3316 = vdwg.mxu0
      %v3317 = vpack.c.bf16 %v3238, %v3238
      %v3318 = vpack.c.bf16 %v3240, %v3240
      %v3319 = vpack.c.bf16 %v3243, %v3243
      %v3320 = vpack.c.bf16 %v3245, %v3245
      %v3321 = vpack.c.bf16 %v3248, %v3248
      %v3322 = vpack.c.bf16 %v3250, %v3250
      %v3323 = vpack.c.bf16 %v3253, %v3253
      %v3324 = vpack.c.bf16 %v3255, %v3255
      %v3325 = vpack.c.bf16 %v3258, %v3258
      %v3326 = vpack.c.bf16 %v3260, %v3260
      %v3327 = vpack.c.bf16 %v3263, %v3263
      %v3328 = vpack.c.bf16 %v3265, %v3265
      %v3329 = vpack.c.bf16 %v3268, %v3268
      %v3330 = vpack.c.bf16 %v3270, %v3270
      %v3331 = vpack.c.bf16 %v3273, %v3273
      %v3332 = vpack.c.bf16 %v3275, %v3275
      %v3333 = vpack.c.bf16 %v3278, %v3278
      %v3334 = vpack.c.bf16 %v3280, %v3280
      %v3335 = vpack.c.bf16 %v3283, %v3283
      %v3336 = vpack.c.bf16 %v3285, %v3285
      %v3337 = vpack.c.bf16 %v3288, %v3288
      %v3338 = vpack.c.bf16 %v3290, %v3290
      %v3339 = vpack.c.bf16 %v3293, %v3293
      %v3340 = vpack.c.bf16 %v3295, %v3295
      %v3341 = vpack.c.bf16 %v3298, %v3298
      %v3342 = vpack.c.bf16 %v3300, %v3300
      %v3343 = vpack.c.bf16 %v3303, %v3303
      %v3344 = vpack.c.bf16 %v3305, %v3305
      %v3345 = vpack.c.bf16 %v3308, %v3308
      %v3346 = vpack.c.bf16 %v3310, %v3310
      %v3347 = vpack.c.bf16 %v3313, %v3313
      %v3348 = vpack.c.bf16 %v3315, %v3315
      %3349 = vst [vmem:[%s248] sm:$0xf] %v3317
      %3350 = vst [vmem:[%s248 + $0x4] sm:$0xf] %v3318
      %3351 = vst [vmem:[%s248 + $0x8] sm:$0xf] %v3319
      %3352 = vst [vmem:[%s248 + $0xc] sm:$0xf] %v3320
      %3353 = vst [vmem:[%s248 + $0x10] sm:$0xf] %v3321
      %3354 = vst [vmem:[%s248 + $0x14] sm:$0xf] %v3322
      %3355 = vst [vmem:[%s248 + $0x18] sm:$0xf] %v3323
      %3356 = vst [vmem:[%s248 + $0x1c] sm:$0xf] %v3324
      %3357 = vst [vmem:[%s248 + $0x20] sm:$0xf] %v3325
      %3358 = vst [vmem:[%s248 + $0x24] sm:$0xf] %v3326
      %3359 = vst [vmem:[%s248 + $0x28] sm:$0xf] %v3327
      %3360 = vst [vmem:[%s248 + $0x2c] sm:$0xf] %v3328
      %3361 = vst [vmem:[%s248 + $0x30] sm:$0xf] %v3329
      %3362 = vst [vmem:[%s248 + $0x34] sm:$0xf] %v3330
      %3363 = vst [vmem:[%s248 + $0x38] sm:$0xf] %v3331
      %3364 = vst [vmem:[%s248 + $0x3c] sm:$0xf] %v3332
      %3365 = vst [vmem:[%s248 + $0x40] sm:$0xf] %v3333
      %3366 = vst [vmem:[%s248 + $0x44] sm:$0xf] %v3334
      %3367 = vst [vmem:[%s248 + $0x48] sm:$0xf] %v3335
      %3368 = vst [vmem:[%s248 + $0x4c] sm:$0xf] %v3336
      %3369 = vst [vmem:[%s248 + $0x50] sm:$0xf] %v3337
      %3370 = vst [vmem:[%s248 + $0x54] sm:$0xf] %v3338
      %3371 = vst [vmem:[%s248 + $0x58] sm:$0xf] %v3339
      %3372 = vst [vmem:[%s248 + $0x5c] sm:$0xf] %v3340
      %3373 = vst [vmem:[%s248 + $0x60] sm:$0xf] %v3341
      %3374 = vst [vmem:[%s248 + $0x64] sm:$0xf] %v3342
      %3375 = vst [vmem:[%s248 + $0x68] sm:$0xf] %v3343
      %3376 = vst [vmem:[%s248 + $0x6c] sm:$0xf] %v3344
      %3377 = vst [vmem:[%s248 + $0x70] sm:$0xf] %v3345
      %3378 = vst [vmem:[%s248 + $0x74] sm:$0xf] %v3346
      %3379 = vst [vmem:[%s248 + $0x78] sm:$0xf] %v3347
      %3380 = vst [vmem:[%s248 + $0x7c] sm:$0xf] %v3348
      %p3381 = scmp.lt.s32.totalorder %s19, 1
      %s3382 = scalar_select %p3381, %s19, 1
      %p3383 = scmp.lt.s32.totalorder %s20, 0
      %s3384 = scalar_select %p3383, %s20, 0
      %s3385 = smul.addr %s3382, 32
      %s3386 = sadd.s32 %s3384, %s3385
      %s3387 = smul.addr %s3386, 4
      %s3388 = scalar_lea.vmem %s4, %s3387
      // Predicated region
      $region41: #{depthwise_separable_conv.1} parent=35 // pred_check
        %p3389 = pneg %p146
      $region42: #{depthwise_separable_conv.1} parent=35 // pred_check_branch
        %3391 = sbr.rel (%p3389) target = $region44
      $region43: #{depthwise_separable_conv.1} parent=35 // pred_region
        _
      $region44: #{depthwise_separable_conv.1} parent=35 // pred_fallthru
        _
    $region36: #{depthwise_separable_conv.1} parent=5 // pred_fallthru
      _
    %p3392 = scmp.le.s32.totalorder 2, %s10
    // Predicated region
    $region45: #{depthwise_separable_conv.1} parent=5 // pred_check
      %p3393 = pneg %p3392
    $region46: #{depthwise_separable_conv.1} parent=5 // pred_check_branch
      %3395 = sbr.rel (%p3393) target = $region48
    $region47: #{depthwise_separable_conv.1} parent=5 // pred_region
      %s3396 = ssub.s32 %s10, 2
      // Predicated region
      $region49: #{depthwise_separable_conv.1} parent=47 // pred_check
        %p3397 = pneg %p152
      $region50: #{depthwise_separable_conv.1} parent=47 // pred_check_branch
        %3399 = sbr.rel (%p3397) target = $region52
      $region51: #{depthwise_separable_conv.1} parent=47 // pred_region
        %p3400 = scmp.lt.s32.totalorder %s21, 1
        %s3401 = scalar_select %p3400, %s21, 1
        %p3402 = scmp.lt.s32.totalorder %s22, 0
        %s3403 = scalar_select %p3402, %s22, 0
        %s3404 = smul.addr %s3401, 32
        %s3405 = sadd.s32 %s3403, %s3404
        %s3406 = smul.addr %s3405, 4
        %s3407 = scalar_lea.vmem %s4, %s3406
      $region52: #{depthwise_separable_conv.1} parent=47 // pred_fallthru
        _
    $region48: #{depthwise_separable_conv.1} parent=5 // pred_fallthru
      _
  $region6: #{depthwise_separable_conv.1} parent=0 // loop_footer
    %s14 = sadd.s32 1, %s10
  $region7: #{depthwise_separable_conv.1} parent=0 // loop_footer_branch
    %9 = sbr.rel target = $region3
  $region8: #{depthwise_separable_conv.1} parent=0 // loop_exit
    _

</llo_original>
